<compile_context>
chip_gen: v7x
topology: tpu7x:2x2x1
jax: 0.10.0
libtpu: 0.0.40
codegen_flags: <defaults>
</compile_context>

<pallas_src>
import jax
import jax.numpy as jnp
from jax import lax
from jax.experimental import pallas as pl
from jax.experimental.pallas import tpu as pltpu

BN_EPS = 1e-5


def make_respath_kernel(N, C, H, W, L):
    HW = H * W
    P = N * HW
    pow2 = ((H & (H - 1)) == 0) and ((W & (W - 1)) == 0)

    def kernel(x_ref, wcat_ref, prm2_ref, prmf_ref, out_ref, carry_ref, patches_ref):
        # ---- border-validity masks, generated in-kernel once per call ----
        pix = lax.broadcasted_iota(jnp.int32, (1, P), 1)
        if pow2:
            q = pix & (HW - 1)              # pixel index within its image
            r = pix & (W - 1)               # column within its row
        else:
            # TODO(synk): relies on Mosaic vector i32 rem for non-power-of-two H/W.
            q = pix % HW
            r = pix % W
        v_up = (q >= W).astype(jnp.float32)           # row h-1 exists
        v_dn = (q < HW - W).astype(jnp.float32)       # row h+1 exists
        v_lf = (r >= 1).astype(jnp.float32)           # col w-1 exists
        v_rt = (r < W - 1).astype(jnp.float32)        # col w+1 exists
        tap_mask = {
            (-1, -1): v_up * v_lf, (-1, 0): v_up, (-1, 1): v_up * v_rt,
            (0, -1): v_lf,         (0, 0): None,  (0, 1): v_rt,
            (1, -1): v_dn * v_lf,  (1, 0): v_dn,  (1, 1): v_dn * v_rt,
        }

        # ---- pack (N, C, HW) -> lane-dense (C, P) carry, once per call ----
        for n in range(N):
            carry_ref[:, pl.ds(n * HW, HW)] = x_ref[n]

        def body(i, carry_unused):
            cur = carry_ref[...]                                   # (C, P)

            # im2col: 9 rolled+masked taps into the persistent scratch (no concat)
            for t in range(9):
                dh, dw = t // 3 - 1, t % 3 - 1
                m = tap_mask[(dh, dw)]
                if m is None:                                      # center tap
                    patches_ref[pl.ds(t * C, C), :] = cur
                else:
                    off = dh * W + dw                              # flat-pixel offset
                    patches_ref[pl.ds(t * C, C), :] = (
                        pltpu.roll(cur, shift=(-off) % P, axis=1) * m)

            # fused 3x3 + 1x1 conv: one MXU matmul (2C, 9C) @ (9C, P), f32 acc
            y = jnp.dot(wcat_ref[i], patches_ref[...],
                        preferred_element_type=jnp.float32)        # (2C, P)
            # conv1x1 bias omitted: cancelled by the train-mode BN below.

            # both branch BatchNorms: one fused stats pass, folded scale+bias
            mean = jnp.mean(y, axis=1, keepdims=True)              # (2C, 1)
            var = jnp.mean(y * y, axis=1, keepdims=True) - mean * mean
            gb = prm2_ref[i]                                       # (2C, 2): [gamma, beta]
            a = lax.rsqrt(var + BN_EPS) * gb[:, 0:1]
            b = gb[:, 1:2] - mean * a
            ynorm = y * a + b                                      # (2C, P)

            main = jnp.maximum(ynorm[:C], 0.0)                     # conv3 branch: BN + ReLU
            z = jnp.maximum(main + ynorm[C:], 0.0)                 # add -> ReLU    (C, P)

            # final BatchNorm (train-mode), folded scale+bias
            mz = jnp.mean(z, axis=1, keepdims=True)
            vz = jnp.mean(z * z, axis=1, keepdims=True) - mz * mz
            pf = prmf_ref[i]                                       # (C, 2)
            af = lax.rsqrt(vz + BN_EPS) * pf[:, 0:1]
            bf = pf[:, 1:2] - mz * af
            carry_ref[...] = z * af + bf                           # carry for next iteration
            return carry_unused

        if L <= 4:
            for i in range(L):          # short fixed trip count: full unroll
                body(i, 0)
        else:
            lax.fori_loop(0, L, body, 0)

        # ---- unpack (C, P) -> (N, C, HW) output, once per call ----
        for n in range(N):
            out_ref[n] = carry_ref[:, pl.ds(n * HW, HW)]

    return kernel


def respath_pallas(x_nchw, W3, W1, PRM):
    """ResPath forward.

    x_nchw : (N, C, H, W) float32   PyTorch layout
    W3     : (L, C, C, 3, 3)        3x3 conv weights (torch OIHW) per iteration
    W1     : (L, C, C)              1x1 conv weights (out, in) per iteration
    PRM    : (L, C, 7)              [g3, b3, g1, b1, gF, bF, conv1-bias]
                                    (the conv1 bias column is only used by the
                                     reference; it cancels under train-mode BN)
    Returns (N, C, H, W) float32.

    Best performance when C % 8 == 0 and H*W % 128 == 0 (lane-dense blocks).
    """
    N, C, H, W = x_nchw.shape
    L = W3.shape[0]
    HW = H * W
    P = N * HW

    x_flat = x_nchw.reshape(N, C, HW).astype(jnp.float32)   # free reshape, no transpose

    # Fused conv weights: rows [0:C] = 3x3 conv (column = tap*C + c_in, tap = kh*3+kw),
    # rows [C:2C] = 1x1 conv placed on the center tap only.
    w3_cat = jnp.transpose(W3.reshape(L, C, C, 9), (0, 1, 3, 2)).reshape(L, C, 9 * C)
    w1_cat = jnp.zeros((L, C, 9 * C), jnp.float32).at[:, :, 4 * C:5 * C].set(W1)
    wcat = jnp.concatenate([w3_cat, w1_cat], axis=1).astype(jnp.float32)       # (L, 2C, 9C)

    # Branch-BN params (rows match wcat rows): [:C]=(g3,b3), [C:]=(g1,b1).
    prm2 = jnp.concatenate(
        [jnp.stack([PRM[:, :, 0], PRM[:, :, 1]], axis=-1),
         jnp.stack([PRM[:, :, 2], PRM[:, :, 3]], axis=-1)], axis=1
    ).astype(jnp.float32)                                                      # (L, 2C, 2)
    prmf = jnp.stack([PRM[:, :, 4], PRM[:, :, 5]], axis=-1).astype(jnp.float32)  # (L, C, 2)

    out_flat = pl.pallas_call(
        make_respath_kernel(N, C, H, W, L),
        out_shape=jax.ShapeDtypeStruct((N, C, HW), jnp.float32),
        grid_spec=pltpu.PrefetchScalarGridSpec(
            num_scalar_prefetch=0,
            grid=(1,),                                   # single step: weights stay VMEM-resident
            in_specs=[
                pl.BlockSpec((N, C, HW), lambda i: (0, 0, 0)),         # x (full block)
                pl.BlockSpec((L, 2 * C, 9 * C), lambda i: (0, 0, 0)),  # fused conv weights
                pl.BlockSpec((L, 2 * C, 2), lambda i: (0, 0, 0)),      # branch-BN gamma/beta
                pl.BlockSpec((L, C, 2), lambda i: (0, 0, 0)),          # final-BN gamma/beta
            ],
            out_specs=pl.BlockSpec((N, C, HW), lambda i: (0, 0, 0)),
            scratch_shapes=[
                pltpu.VMEM((C, P), jnp.float32),         # lane-dense carry across iterations
                pltpu.VMEM((9 * C, P), jnp.float32),     # im2col patches (reused every iteration)
            ],
        ),
        compiler_params=pltpu.CompilerParams(dimension_semantics=("arbitrary",)),
    )(x_flat, wcat, prm2, prmf)

    return out_flat.reshape(N, C, H, W)


def respath_reference(x_nchw, W3, W1, PRM):
    """Pure-JAX NCHW reference mirroring the torch forward (train-mode BN)."""

    def bn(v, gamma, beta):
        mean = jnp.mean(v, axis=(0, 2, 3), keepdims=True)
        var = jnp.var(v, axis=(0, 2, 3), keepdims=True)        # biased
        return ((v - mean) / jnp.sqrt(var + BN_EPS)) * gamma[None, :, None, None] \
            + beta[None, :, None, None]

    out = x_nchw
    for i in range(W3.shape[0]):
        cur = out
        y3 = lax.conv_general_dilated(cur, W3[i], (1, 1), "SAME",
                                      dimension_numbers=("NCHW", "OIHW", "NCHW"))
        main = jax.nn.relu(bn(y3, PRM[i, :, 0], PRM[i, :, 1]))
        y1 = jnp.einsum("nihw,oi->nohw", cur, W1[i]) + PRM[i, :, 6][None, :, None, None]
        shortcut = bn(y1, PRM[i, :, 2], PRM[i, :, 3])
        z = jax.nn.relu(shortcut + main)
        out = bn(z, PRM[i, :, 4], PRM[i, :, 5])
    return out


if __name__ == "__main__":
    N, C, H, W, L = 2, 8, 16, 16, 3   # ResPath(in_ch=8, out_ch=8, length=3)

    key = jax.random.PRNGKey(0)
    kx, k3, k1, kb, kg3, kg1, kgf = jax.random.split(key, 7)

    x = jax.random.normal(kx, (N, C, H, W), jnp.float32)      # PyTorch NCHW input

    # Deterministic parameter init (kaiming-style conv weights, BN weight
    # ~ N(1, 0.02), BN bias = 0, small conv1 bias).
    W3 = jax.random.normal(k3, (L, C, C, 3, 3), jnp.float32) * (2.0 / (C * 9)) ** 0.5
    W1 = jax.random.normal(k1, (L, C, C), jnp.float32) * (2.0 / C) ** 0.5
    b1 = 0.1 * jax.random.normal(kb, (L, C), jnp.float32)
    g3 = 1.0 + 0.02 * jax.random.normal(kg3, (L, C), jnp.float32)
    g1 = 1.0 + 0.02 * jax.random.normal(kg1, (L, C), jnp.float32)
    gf = 1.0 + 0.02 * jax.random.normal(kgf, (L, C), jnp.float32)
    zeros = jnp.zeros((L, C), jnp.float32)
    # columns: gamma3, beta3, gamma1, beta1, gammaF, betaF, conv1-bias
    PRM = jnp.stack([g3, zeros, g1, zeros, gf, zeros, b1], axis=2)   # (L, C, 7)

    out = respath_pallas(x, W3, W1, PRM)
    out = jax.block_until_ready(out)
    assert out.shape == (N, C, H, W)

    ref = respath_reference(x, W3, W1, PRM)
    max_err = float(jnp.max(jnp.abs(out - ref)))
    if not bool(jnp.allclose(out, ref, atol=5e-3, rtol=5e-3)):
        raise SystemExit(f"mismatch vs reference, max abs err = {max_err}")

    print("KERNEL_OK")
</pallas_src>

<mosaic_0001>
module attributes {stable_mosaic.version = 11 : i64} {
  func.func @kernel(%arg0: i32, %arg1: memref<2x8x256xf32, #tpu.memory_space<vmem>>, %arg2: memref<3x16x72xf32, #tpu.memory_space<vmem>>, %arg3: memref<3x16x2xf32, #tpu.memory_space<vmem>>, %arg4: memref<3x8x2xf32, #tpu.memory_space<vmem>>, %arg5: memref<2x8x256xf32, #tpu.memory_space<vmem>>, %arg6: memref<8x512xf32, #tpu.memory_space<vmem>>, %arg7: memref<72x512xf32, #tpu.memory_space<vmem>>) attributes {dimension_semantics = [#tpu.dimension_semantics<arbitrary>], iteration_bounds = array<i64: 1>, scalar_prefetch = 0 : i64, scratch_operands = 2 : i64, tpu.core_type = #tpu.core_type<tc>, window_params = [{pipeline_mode = #tpu.pipeline_mode<synchronous>, transform_indices = @transform_0, window_bounds = array<i64: 2, 8, 256>}, {pipeline_mode = #tpu.pipeline_mode<synchronous>, transform_indices = @transform_1, window_bounds = array<i64: 3, 16, 72>}, {pipeline_mode = #tpu.pipeline_mode<synchronous>, transform_indices = @transform_2, window_bounds = array<i64: 3, 16, 2>}, {pipeline_mode = #tpu.pipeline_mode<synchronous>, transform_indices = @transform_3, window_bounds = array<i64: 3, 8, 2>}, {pipeline_mode = #tpu.pipeline_mode<synchronous>, transform_indices = @transform_4, window_bounds = array<i64: 2, 8, 256>}]} {
    %0 = tpu.iota {dimensions = array<i32: 1>} : vector<1x512xi32>
    %c255_i32 = arith.constant 255 : i32
    %1 = vector.broadcast %c255_i32 : i32 to vector<1x512xi32>
    %2 = arith.andi %0, %1 : vector<1x512xi32>
    %c15_i32 = arith.constant 15 : i32
    %3 = vector.broadcast %c15_i32 : i32 to vector<1x512xi32>
    %4 = arith.andi %0, %3 : vector<1x512xi32>
    %c16_i32 = arith.constant 16 : i32
    %5 = vector.broadcast %c16_i32 : i32 to vector<1x512xi32>
    %6 = arith.cmpi sge, %2, %5 : vector<1x512xi32>
    %7 = arith.extui %6 : vector<1x512xi1> to vector<1x512xi32>
    %8 = arith.sitofp %7 : vector<1x512xi32> to vector<1x512xf32>
    %c240_i32 = arith.constant 240 : i32
    %9 = vector.broadcast %c240_i32 : i32 to vector<1x512xi32>
    %10 = arith.cmpi slt, %2, %9 : vector<1x512xi32>
    %11 = arith.extui %10 : vector<1x512xi1> to vector<1x512xi32>
    %12 = arith.sitofp %11 : vector<1x512xi32> to vector<1x512xf32>
    %c1_i32 = arith.constant 1 : i32
    %13 = vector.broadcast %c1_i32 : i32 to vector<1x512xi32>
    %14 = arith.cmpi sge, %4, %13 : vector<1x512xi32>
    %15 = arith.extui %14 : vector<1x512xi1> to vector<1x512xi32>
    %16 = arith.sitofp %15 : vector<1x512xi32> to vector<1x512xf32>
    %c15_i32_0 = arith.constant 15 : i32
    %17 = vector.broadcast %c15_i32_0 : i32 to vector<1x512xi32>
    %18 = arith.cmpi slt, %4, %17 : vector<1x512xi32>
    %19 = arith.extui %18 : vector<1x512xi1> to vector<1x512xi32>
    %20 = arith.sitofp %19 : vector<1x512xi32> to vector<1x512xf32>
    %21 = arith.mulf %8, %16 : vector<1x512xf32>
    %22 = arith.mulf %8, %20 : vector<1x512xf32>
    %23 = arith.mulf %12, %16 : vector<1x512xf32>
    %24 = arith.mulf %12, %20 : vector<1x512xf32>
    %c0 = arith.constant 0 : index
    %c0_1 = arith.constant 0 : index
    %c0_2 = arith.constant 0 : index
    %25 = vector.load %arg1[%c0, %c0_1, %c0_2] : memref<2x8x256xf32, #tpu.memory_space<vmem>>, vector<1x8x256xf32>
    %26 = vector.shape_cast %25 : vector<1x8x256xf32> to vector<8x256xf32>
    %c0_3 = arith.constant 0 : index
    %c0_4 = arith.constant 0 : index
    %27 = vector.load %arg6[%c0_3, %c0_4] : memref<8x512xf32, #tpu.memory_space<vmem>>, vector<8x256xf32>
    tpu.vector_store %arg6[%c0_3, %c0_4], %26 {strides = array<i32>} : memref<8x512xf32, #tpu.memory_space<vmem>>, vector<8x256xf32>,
    %c1 = arith.constant 1 : index
    %c0_5 = arith.constant 0 : index
    %c0_6 = arith.constant 0 : index
    %28 = vector.load %arg1[%c1, %c0_5, %c0_6] : memref<2x8x256xf32, #tpu.memory_space<vmem>>, vector<1x8x256xf32>
    %29 = vector.shape_cast %28 : vector<1x8x256xf32> to vector<8x256xf32>
    %c0_7 = arith.constant 0 : index
    %c256 = arith.constant 256 : index
    %30 = vector.load %arg6[%c0_7, %c256] : memref<8x512xf32, #tpu.memory_space<vmem>>, vector<8x256xf32>
    tpu.vector_store %arg6[%c0_7, %c256], %29 {strides = array<i32>} : memref<8x512xf32, #tpu.memory_space<vmem>>, vector<8x256xf32>,
    %c0_8 = arith.constant 0 : index
    %c0_9 = arith.constant 0 : index
    %31 = vector.load %arg6[%c0_8, %c0_9] : memref<8x512xf32, #tpu.memory_space<vmem>>, vector<8x512xf32>
    %c17_i32 = arith.constant 17 : i32
    %32 = tpu.dynamic_rotate %31 by %c17_i32 dim 1 : vector<8x512xf32>, i32 -> vector<8x512xf32>
    %33 = vector.broadcast %21 : vector<1x512xf32> to vector<8x512xf32>
    %34 = arith.mulf %32, %33 : vector<8x512xf32>
    %c0_10 = arith.constant 0 : index
    %c0_11 = arith.constant 0 : index
    %35 = vector.load %arg7[%c0_10, %c0_11] : memref<72x512xf32, #tpu.memory_space<vmem>>, vector<8x512xf32>
    tpu.vector_store %arg7[%c0_10, %c0_11], %34 {strides = array<i32>} : memref<72x512xf32, #tpu.memory_space<vmem>>, vector<8x512xf32>,
    %c16_i32_12 = arith.constant 16 : i32
    %36 = tpu.dynamic_rotate %31 by %c16_i32_12 dim 1 : vector<8x512xf32>, i32 -> vector<8x512xf32>
    %37 = vector.broadcast %8 : vector<1x512xf32> to vector<8x512xf32>
    %38 = arith.mulf %36, %37 : vector<8x512xf32>
    %c8 = arith.constant 8 : index
    %c0_13 = arith.constant 0 : index
    %39 = vector.load %arg7[%c8, %c0_13] : memref<72x512xf32, #tpu.memory_space<vmem>>, vector<8x512xf32>
    tpu.vector_store %arg7[%c8, %c0_13], %38 {strides = array<i32>} : memref<72x512xf32, #tpu.memory_space<vmem>>, vector<8x512xf32>,
    %c15_i32_14 = arith.constant 15 : i32
    %40 = tpu.dynamic_rotate %31 by %c15_i32_14 dim 1 : vector<8x512xf32>, i32 -> vector<8x512xf32>
    %41 = vector.broadcast %22 : vector<1x512xf32> to vector<8x512xf32>
    %42 = arith.mulf %40, %41 : vector<8x512xf32>
    %c16 = arith.constant 16 : index
    %c0_15 = arith.constant 0 : index
    %43 = vector.load %arg7[%c16, %c0_15] : memref<72x512xf32, #tpu.memory_space<vmem>>, vector<8x512xf32>
    tpu.vector_store %arg7[%c16, %c0_15], %42 {strides = array<i32>} : memref<72x512xf32, #tpu.memory_space<vmem>>, vector<8x512xf32>,
    %c1_i32_16 = arith.constant 1 : i32
    %44 = tpu.dynamic_rotate %31 by %c1_i32_16 dim 1 : vector<8x512xf32>, i32 -> vector<8x512xf32>
    %45 = vector.broadcast %16 : vector<1x512xf32> to vector<8x512xf32>
    %46 = arith.mulf %44, %45 : vector<8x512xf32>
    %c24 = arith.constant 24 : index
    %c0_17 = arith.constant 0 : index
    %47 = vector.load %arg7[%c24, %c0_17] : memref<72x512xf32, #tpu.memory_space<vmem>>, vector<8x512xf32>
    tpu.vector_store %arg7[%c24, %c0_17], %46 {strides = array<i32>} : memref<72x512xf32, #tpu.memory_space<vmem>>, vector<8x512xf32>,
    %c32 = arith.constant 32 : index
    %c0_18 = arith.constant 0 : index
    %48 = vector.load %arg7[%c32, %c0_18] : memref<72x512xf32, #tpu.memory_space<vmem>>, vector<8x512xf32>
    tpu.vector_store %arg7[%c32, %c0_18], %31 {strides = array<i32>} : memref<72x512xf32, #tpu.memory_space<vmem>>, vector<8x512xf32>,
    %c511_i32 = arith.constant 511 : i32
    %49 = tpu.dynamic_rotate %31 by %c511_i32 dim 1 : vector<8x512xf32>, i32 -> vector<8x512xf32>
    %50 = vector.broadcast %20 : vector<1x512xf32> to vector<8x512xf32>
    %51 = arith.mulf %49, %50 : vector<8x512xf32>
    %c40 = arith.constant 40 : index
    %c0_19 = arith.constant 0 : index
    %52 = vector.load %arg7[%c40, %c0_19] : memref<72x512xf32, #tpu.memory_space<vmem>>, vector<8x512xf32>
    tpu.vector_store %arg7[%c40, %c0_19], %51 {strides = array<i32>} : memref<72x512xf32, #tpu.memory_space<vmem>>, vector<8x512xf32>,
    %c497_i32 = arith.constant 497 : i32
    %53 = tpu.dynamic_rotate %31 by %c497_i32 dim 1 : vector<8x512xf32>, i32 -> vector<8x512xf32>
    %54 = vector.broadcast %23 : vector<1x512xf32> to vector<8x512xf32>
    %55 = arith.mulf %53, %54 : vector<8x512xf32>
    %c48 = arith.constant 48 : index
    %c0_20 = arith.constant 0 : index
    %56 = vector.load %arg7[%c48, %c0_20] : memref<72x512xf32, #tpu.memory_space<vmem>>, vector<8x512xf32>
    tpu.vector_store %arg7[%c48, %c0_20], %55 {strides = array<i32>} : memref<72x512xf32, #tpu.memory_space<vmem>>, vector<8x512xf32>,
    %c496_i32 = arith.constant 496 : i32
    %57 = tpu.dynamic_rotate %31 by %c496_i32 dim 1 : vector<8x512xf32>, i32 -> vector<8x512xf32>
    %58 = vector.broadcast %12 : vector<1x512xf32> to vector<8x512xf32>
    %59 = arith.mulf %57, %58 : vector<8x512xf32>
    %c56 = arith.constant 56 : index
    %c0_21 = arith.constant 0 : index
    %60 = vector.load %arg7[%c56, %c0_21] : memref<72x512xf32, #tpu.memory_space<vmem>>, vector<8x512xf32>
    tpu.vector_store %arg7[%c56, %c0_21], %59 {strides = array<i32>} : memref<72x512xf32, #tpu.memory_space<vmem>>, vector<8x512xf32>,
    %c495_i32 = arith.constant 495 : i32
    %61 = tpu.dynamic_rotate %31 by %c495_i32 dim 1 : vector<8x512xf32>, i32 -> vector<8x512xf32>
    %62 = vector.broadcast %24 : vector<1x512xf32> to vector<8x512xf32>
    %63 = arith.mulf %61, %62 : vector<8x512xf32>
    %c64 = arith.constant 64 : index
    %c0_22 = arith.constant 0 : index
    %64 = vector.load %arg7[%c64, %c0_22] : memref<72x512xf32, #tpu.memory_space<vmem>>, vector<8x512xf32>
    tpu.vector_store %arg7[%c64, %c0_22], %63 {strides = array<i32>} : memref<72x512xf32, #tpu.memory_space<vmem>>, vector<8x512xf32>,
    %c0_23 = arith.constant 0 : index
    %c0_24 = arith.constant 0 : index
    %c0_25 = arith.constant 0 : index
    %65 = vector.load %arg2[%c0_23, %c0_24, %c0_25] : memref<3x16x72xf32, #tpu.memory_space<vmem>>, vector<1x16x72xf32>
    %66 = vector.shape_cast %65 : vector<1x16x72xf32> to vector<16x72xf32>
    %c0_26 = arith.constant 0 : index
    %c0_27 = arith.constant 0 : index
    %67 = vector.load %arg7[%c0_26, %c0_27] : memref<72x512xf32, #tpu.memory_space<vmem>>, vector<72x512xf32>
    %cst = arith.constant dense<0.000000e+00> : vector<16x512xf32>
    %68 = tpu.matmul %66, %67, %cst {dimension_numbers = #tpu.dot_dimension_numbers<[1], [0], [0], [1], [0, 0, 1, 1], [], []>} : vector<16x72xf32>, vector<72x512xf32>, vector<16x512xf32> -> vector<16x512xf32>
    %cst_28 = arith.constant dense<0.000000e+00> : vector<16xf32>
    %69 = vector.multi_reduction <add>, %68, %cst_28 [1] : vector<16x512xf32> to vector<16xf32>
    %70 = vector.shape_cast %69 : vector<16xf32> to vector<16x1xf32>
    %cst_29 = arith.constant 5.120000e+02 : f32
    %71 = vector.broadcast %cst_29 : f32 to vector<16x1xf32>
    %72 = arith.divf %70, %71 : vector<16x1xf32>
    %73 = arith.mulf %68, %68 : vector<16x512xf32>
    %cst_30 = arith.constant dense<0.000000e+00> : vector<16xf32>
    %74 = vector.multi_reduction <add>, %73, %cst_30 [1] : vector<16x512xf32> to vector<16xf32>
    %75 = vector.shape_cast %74 : vector<16xf32> to vector<16x1xf32>
    %cst_31 = arith.constant 5.120000e+02 : f32
    %76 = vector.broadcast %cst_31 : f32 to vector<16x1xf32>
    %77 = arith.divf %75, %76 : vector<16x1xf32>
    %78 = arith.mulf %72, %72 : vector<16x1xf32>
    %79 = arith.subf %77, %78 : vector<16x1xf32>
    %c0_32 = arith.constant 0 : index
    %c0_33 = arith.constant 0 : index
    %c0_34 = arith.constant 0 : index
    %80 = vector.load %arg3[%c0_32, %c0_33, %c0_34] : memref<3x16x2xf32, #tpu.memory_space<vmem>>, vector<1x16x2xf32>
    %81 = vector.shape_cast %80 : vector<1x16x2xf32> to vector<16x2xf32>
    %cst_35 = arith.constant 9.99999974E-6 : f32
    %82 = vector.broadcast %cst_35 : f32 to vector<16x1xf32>
    %83 = arith.addf %79, %82 : vector<16x1xf32>
    %84 = math.rsqrt %83 : vector<16x1xf32>
    %85 = vector.extract_strided_slice %81 {offsets = [0, 0], sizes = [16, 1], strides = [1, 1]} : vector<16x2xf32> to vector<16x1xf32>
    %86 = arith.mulf %84, %85 : vector<16x1xf32>
    %87 = vector.extract_strided_slice %81 {offsets = [0, 1], sizes = [16, 1], strides = [1, 1]} : vector<16x2xf32> to vector<16x1xf32>
    %88 = arith.mulf %72, %86 : vector<16x1xf32>
    %89 = arith.subf %87, %88 : vector<16x1xf32>
    %90 = vector.broadcast %86 : vector<16x1xf32> to vector<16x512xf32>
    %91 = arith.mulf %68, %90 : vector<16x512xf32>
    %92 = vector.broadcast %89 : vector<16x1xf32> to vector<16x512xf32>
    %93 = arith.addf %91, %92 : vector<16x512xf32>
    %94 = vector.extract_strided_slice %93 {offsets = [0, 0], sizes = [8, 512], strides = [1, 1]} : vector<16x512xf32> to vector<8x512xf32>
    %cst_36 = arith.constant 0.000000e+00 : f32
    %95 = vector.broadcast %cst_36 : f32 to vector<8x512xf32>
    %96 = arith.maximumf %94, %95 : vector<8x512xf32>
    %97 = vector.extract_strided_slice %93 {offsets = [8, 0], sizes = [8, 512], strides = [1, 1]} : vector<16x512xf32> to vector<8x512xf32>
    %98 = arith.addf %96, %97 : vector<8x512xf32>
    %cst_37 = arith.constant 0.000000e+00 : f32
    %99 = vector.broadcast %cst_37 : f32 to vector<8x512xf32>
    %100 = arith.maximumf %98, %99 : vector<8x512xf32>
    %cst_38 = arith.constant dense<0.000000e+00> : vector<8xf32>
    %101 = vector.multi_reduction <add>, %100, %cst_38 [1] : vector<8x512xf32> to vector<8xf32>
    %102 = vector.shape_cast %101 : vector<8xf32> to vector<8x1xf32>
    %cst_39 = arith.constant 5.120000e+02 : f32
    %103 = vector.broadcast %cst_39 : f32 to vector<8x1xf32>
    %104 = arith.divf %102, %103 : vector<8x1xf32>
    %105 = arith.mulf %100, %100 : vector<8x512xf32>
    %cst_40 = arith.constant dense<0.000000e+00> : vector<8xf32>
    %106 = vector.multi_reduction <add>, %105, %cst_40 [1] : vector<8x512xf32> to vector<8xf32>
    %107 = vector.shape_cast %106 : vector<8xf32> to vector<8x1xf32>
    %cst_41 = arith.constant 5.120000e+02 : f32
    %108 = vector.broadcast %cst_41 : f32 to vector<8x1xf32>
    %109 = arith.divf %107, %108 : vector<8x1xf32>
    %110 = arith.mulf %104, %104 : vector<8x1xf32>
    %111 = arith.subf %109, %110 : vector<8x1xf32>
    %c0_42 = arith.constant 0 : index
    %c0_43 = arith.constant 0 : index
    %c0_44 = arith.constant 0 : index
    %112 = vector.load %arg4[%c0_42, %c0_43, %c0_44] : memref<3x8x2xf32, #tpu.memory_space<vmem>>, vector<1x8x2xf32>
    %113 = vector.shape_cast %112 : vector<1x8x2xf32> to vector<8x2xf32>
    %cst_45 = arith.constant 9.99999974E-6 : f32
    %114 = vector.broadcast %cst_45 : f32 to vector<8x1xf32>
    %115 = arith.addf %111, %114 : vector<8x1xf32>
    %116 = math.rsqrt %115 : vector<8x1xf32>
    %117 = vector.extract_strided_slice %113 {offsets = [0, 0], sizes = [8, 1], strides = [1, 1]} : vector<8x2xf32> to vector<8x1xf32>
    %118 = arith.mulf %116, %117 : vector<8x1xf32>
    %119 = vector.extract_strided_slice %113 {offsets = [0, 1], sizes = [8, 1], strides = [1, 1]} : vector<8x2xf32> to vector<8x1xf32>
    %120 = arith.mulf %104, %118 : vector<8x1xf32>
    %121 = arith.subf %119, %120 : vector<8x1xf32>
    %122 = vector.broadcast %118 : vector<8x1xf32> to vector<8x512xf32>
    %123 = arith.mulf %100, %122 : vector<8x512xf32>
    %124 = vector.broadcast %121 : vector<8x1xf32> to vector<8x512xf32>
    %125 = arith.addf %123, %124 : vector<8x512xf32>
    %c0_46 = arith.constant 0 : index
    %c0_47 = arith.constant 0 : index
    %126 = vector.load %arg6[%c0_46, %c0_47] : memref<8x512xf32, #tpu.memory_space<vmem>>, vector<8x512xf32>
    tpu.vector_store %arg6[%c0_46, %c0_47], %125 {strides = array<i32>} : memref<8x512xf32, #tpu.memory_space<vmem>>, vector<8x512xf32>,
    %c0_48 = arith.constant 0 : index
    %c0_49 = arith.constant 0 : index
    %127 = vector.load %arg6[%c0_48, %c0_49] : memref<8x512xf32, #tpu.memory_space<vmem>>, vector<8x512xf32>
    %c17_i32_50 = arith.constant 17 : i32
    %128 = tpu.dynamic_rotate %127 by %c17_i32_50 dim 1 : vector<8x512xf32>, i32 -> vector<8x512xf32>
    %129 = vector.broadcast %21 : vector<1x512xf32> to vector<8x512xf32>
    %130 = arith.mulf %128, %129 : vector<8x512xf32>
    %c0_51 = arith.constant 0 : index
    %c0_52 = arith.constant 0 : index
    %131 = vector.load %arg7[%c0_51, %c0_52] : memref<72x512xf32, #tpu.memory_space<vmem>>, vector<8x512xf32>
    tpu.vector_store %arg7[%c0_51, %c0_52], %130 {strides = array<i32>} : memref<72x512xf32, #tpu.memory_space<vmem>>, vector<8x512xf32>,
    %c16_i32_53 = arith.constant 16 : i32
    %132 = tpu.dynamic_rotate %127 by %c16_i32_53 dim 1 : vector<8x512xf32>, i32 -> vector<8x512xf32>
    %133 = vector.broadcast %8 : vector<1x512xf32> to vector<8x512xf32>
    %134 = arith.mulf %132, %133 : vector<8x512xf32>
    %c8_54 = arith.constant 8 : index
    %c0_55 = arith.constant 0 : index
    %135 = vector.load %arg7[%c8_54, %c0_55] : memref<72x512xf32, #tpu.memory_space<vmem>>, vector<8x512xf32>
    tpu.vector_store %arg7[%c8_54, %c0_55], %134 {strides = array<i32>} : memref<72x512xf32, #tpu.memory_space<vmem>>, vector<8x512xf32>,
    %c15_i32_56 = arith.constant 15 : i32
    %136 = tpu.dynamic_rotate %127 by %c15_i32_56 dim 1 : vector<8x512xf32>, i32 -> vector<8x512xf32>
    %137 = vector.broadcast %22 : vector<1x512xf32> to vector<8x512xf32>
    %138 = arith.mulf %136, %137 : vector<8x512xf32>
    %c16_57 = arith.constant 16 : index
    %c0_58 = arith.constant 0 : index
    %139 = vector.load %arg7[%c16_57, %c0_58] : memref<72x512xf32, #tpu.memory_space<vmem>>, vector<8x512xf32>
    tpu.vector_store %arg7[%c16_57, %c0_58], %138 {strides = array<i32>} : memref<72x512xf32, #tpu.memory_space<vmem>>, vector<8x512xf32>,
    %c1_i32_59 = arith.constant 1 : i32
    %140 = tpu.dynamic_rotate %127 by %c1_i32_59 dim 1 : vector<8x512xf32>, i32 -> vector<8x512xf32>
    %141 = vector.broadcast %16 : vector<1x512xf32> to vector<8x512xf32>
    %142 = arith.mulf %140, %141 : vector<8x512xf32>
    %c24_60 = arith.constant 24 : index
    %c0_61 = arith.constant 0 : index
    %143 = vector.load %arg7[%c24_60, %c0_61] : memref<72x512xf32, #tpu.memory_space<vmem>>, vector<8x512xf32>
    tpu.vector_store %arg7[%c24_60, %c0_61], %142 {strides = array<i32>} : memref<72x512xf32, #tpu.memory_space<vmem>>, vector<8x512xf32>,
    %c32_62 = arith.constant 32 : index
    %c0_63 = arith.constant 0 : index
    %144 = vector.load %arg7[%c32_62, %c0_63] : memref<72x512xf32, #tpu.memory_space<vmem>>, vector<8x512xf32>
    tpu.vector_store %arg7[%c32_62, %c0_63], %127 {strides = array<i32>} : memref<72x512xf32, #tpu.memory_space<vmem>>, vector<8x512xf32>,
    %c511_i32_64 = arith.constant 511 : i32
    %145 = tpu.dynamic_rotate %127 by %c511_i32_64 dim 1 : vector<8x512xf32>, i32 -> vector<8x512xf32>
    %146 = vector.broadcast %20 : vector<1x512xf32> to vector<8x512xf32>
    %147 = arith.mulf %145, %146 : vector<8x512xf32>
    %c40_65 = arith.constant 40 : index
    %c0_66 = arith.constant 0 : index
    %148 = vector.load %arg7[%c40_65, %c0_66] : memref<72x512xf32, #tpu.memory_space<vmem>>, vector<8x512xf32>
    tpu.vector_store %arg7[%c40_65, %c0_66], %147 {strides = array<i32>} : memref<72x512xf32, #tpu.memory_space<vmem>>, vector<8x512xf32>,
    %c497_i32_67 = arith.constant 497 : i32
    %149 = tpu.dynamic_rotate %127 by %c497_i32_67 dim 1 : vector<8x512xf32>, i32 -> vector<8x512xf32>
    %150 = vector.broadcast %23 : vector<1x512xf32> to vector<8x512xf32>
    %151 = arith.mulf %149, %150 : vector<8x512xf32>
    %c48_68 = arith.constant 48 : index
    %c0_69 = arith.constant 0 : index
    %152 = vector.load %arg7[%c48_68, %c0_69] : memref<72x512xf32, #tpu.memory_space<vmem>>, vector<8x512xf32>
    tpu.vector_store %arg7[%c48_68, %c0_69], %151 {strides = array<i32>} : memref<72x512xf32, #tpu.memory_space<vmem>>, vector<8x512xf32>,
    %c496_i32_70 = arith.constant 496 : i32
    %153 = tpu.dynamic_rotate %127 by %c496_i32_70 dim 1 : vector<8x512xf32>, i32 -> vector<8x512xf32>
    %154 = vector.broadcast %12 : vector<1x512xf32> to vector<8x512xf32>
    %155 = arith.mulf %153, %154 : vector<8x512xf32>
    %c56_71 = arith.constant 56 : index
    %c0_72 = arith.constant 0 : index
    %156 = vector.load %arg7[%c56_71, %c0_72] : memref<72x512xf32, #tpu.memory_space<vmem>>, vector<8x512xf32>
    tpu.vector_store %arg7[%c56_71, %c0_72], %155 {strides = array<i32>} : memref<72x512xf32, #tpu.memory_space<vmem>>, vector<8x512xf32>,
    %c495_i32_73 = arith.constant 495 : i32
    %157 = tpu.dynamic_rotate %127 by %c495_i32_73 dim 1 : vector<8x512xf32>, i32 -> vector<8x512xf32>
    %158 = vector.broadcast %24 : vector<1x512xf32> to vector<8x512xf32>
    %159 = arith.mulf %157, %158 : vector<8x512xf32>
    %c64_74 = arith.constant 64 : index
    %c0_75 = arith.constant 0 : index
    %160 = vector.load %arg7[%c64_74, %c0_75] : memref<72x512xf32, #tpu.memory_space<vmem>>, vector<8x512xf32>
    tpu.vector_store %arg7[%c64_74, %c0_75], %159 {strides = array<i32>} : memref<72x512xf32, #tpu.memory_space<vmem>>, vector<8x512xf32>,
    %c1_76 = arith.constant 1 : index
    %c0_77 = arith.constant 0 : index
    %c0_78 = arith.constant 0 : index
    %161 = vector.load %arg2[%c1_76, %c0_77, %c0_78] : memref<3x16x72xf32, #tpu.memory_space<vmem>>, vector<1x16x72xf32>
    %162 = vector.shape_cast %161 : vector<1x16x72xf32> to vector<16x72xf32>
    %c0_79 = arith.constant 0 : index
    %c0_80 = arith.constant 0 : index
    %163 = vector.load %arg7[%c0_79, %c0_80] : memref<72x512xf32, #tpu.memory_space<vmem>>, vector<72x512xf32>
    %cst_81 = arith.constant dense<0.000000e+00> : vector<16x512xf32>
    %164 = tpu.matmul %162, %163, %cst_81 {dimension_numbers = #tpu.dot_dimension_numbers<[1], [0], [0], [1], [0, 0, 1, 1], [], []>} : vector<16x72xf32>, vector<72x512xf32>, vector<16x512xf32> -> vector<16x512xf32>
    %cst_82 = arith.constant dense<0.000000e+00> : vector<16xf32>
    %165 = vector.multi_reduction <add>, %164, %cst_82 [1] : vector<16x512xf32> to vector<16xf32>
    %166 = vector.shape_cast %165 : vector<16xf32> to vector<16x1xf32>
    %cst_83 = arith.constant 5.120000e+02 : f32
    %167 = vector.broadcast %cst_83 : f32 to vector<16x1xf32>
    %168 = arith.divf %166, %167 : vector<16x1xf32>
    %169 = arith.mulf %164, %164 : vector<16x512xf32>
    %cst_84 = arith.constant dense<0.000000e+00> : vector<16xf32>
    %170 = vector.multi_reduction <add>, %169, %cst_84 [1] : vector<16x512xf32> to vector<16xf32>
    %171 = vector.shape_cast %170 : vector<16xf32> to vector<16x1xf32>
    %cst_85 = arith.constant 5.120000e+02 : f32
    %172 = vector.broadcast %cst_85 : f32 to vector<16x1xf32>
    %173 = arith.divf %171, %172 : vector<16x1xf32>
    %174 = arith.mulf %168, %168 : vector<16x1xf32>
    %175 = arith.subf %173, %174 : vector<16x1xf32>
    %c1_86 = arith.constant 1 : index
    %c0_87 = arith.constant 0 : index
    %c0_88 = arith.constant 0 : index
    %176 = vector.load %arg3[%c1_86, %c0_87, %c0_88] : memref<3x16x2xf32, #tpu.memory_space<vmem>>, vector<1x16x2xf32>
    %177 = vector.shape_cast %176 : vector<1x16x2xf32> to vector<16x2xf32>
    %cst_89 = arith.constant 9.99999974E-6 : f32
    %178 = vector.broadcast %cst_89 : f32 to vector<16x1xf32>
    %179 = arith.addf %175, %178 : vector<16x1xf32>
    %180 = math.rsqrt %179 : vector<16x1xf32>
    %181 = vector.extract_strided_slice %177 {offsets = [0, 0], sizes = [16, 1], strides = [1, 1]} : vector<16x2xf32> to vector<16x1xf32>
    %182 = arith.mulf %180, %181 : vector<16x1xf32>
    %183 = vector.extract_strided_slice %177 {offsets = [0, 1], sizes = [16, 1], strides = [1, 1]} : vector<16x2xf32> to vector<16x1xf32>
    %184 = arith.mulf %168, %182 : vector<16x1xf32>
    %185 = arith.subf %183, %184 : vector<16x1xf32>
    %186 = vector.broadcast %182 : vector<16x1xf32> to vector<16x512xf32>
    %187 = arith.mulf %164, %186 : vector<16x512xf32>
    %188 = vector.broadcast %185 : vector<16x1xf32> to vector<16x512xf32>
    %189 = arith.addf %187, %188 : vector<16x512xf32>
    %190 = vector.extract_strided_slice %189 {offsets = [0, 0], sizes = [8, 512], strides = [1, 1]} : vector<16x512xf32> to vector<8x512xf32>
    %cst_90 = arith.constant 0.000000e+00 : f32
    %191 = vector.broadcast %cst_90 : f32 to vector<8x512xf32>
    %192 = arith.maximumf %190, %191 : vector<8x512xf32>
    %193 = vector.extract_strided_slice %189 {offsets = [8, 0], sizes = [8, 512], strides = [1, 1]} : vector<16x512xf32> to vector<8x512xf32>
    %194 = arith.addf %192, %193 : vector<8x512xf32>
    %cst_91 = arith.constant 0.000000e+00 : f32
    %195 = vector.broadcast %cst_91 : f32 to vector<8x512xf32>
    %196 = arith.maximumf %194, %195 : vector<8x512xf32>
    %cst_92 = arith.constant dense<0.000000e+00> : vector<8xf32>
    %197 = vector.multi_reduction <add>, %196, %cst_92 [1] : vector<8x512xf32> to vector<8xf32>
    %198 = vector.shape_cast %197 : vector<8xf32> to vector<8x1xf32>
    %cst_93 = arith.constant 5.120000e+02 : f32
    %199 = vector.broadcast %cst_93 : f32 to vector<8x1xf32>
    %200 = arith.divf %198, %199 : vector<8x1xf32>
    %201 = arith.mulf %196, %196 : vector<8x512xf32>
    %cst_94 = arith.constant dense<0.000000e+00> : vector<8xf32>
    %202 = vector.multi_reduction <add>, %201, %cst_94 [1] : vector<8x512xf32> to vector<8xf32>
    %203 = vector.shape_cast %202 : vector<8xf32> to vector<8x1xf32>
    %cst_95 = arith.constant 5.120000e+02 : f32
    %204 = vector.broadcast %cst_95 : f32 to vector<8x1xf32>
    %205 = arith.divf %203, %204 : vector<8x1xf32>
    %206 = arith.mulf %200, %200 : vector<8x1xf32>
    %207 = arith.subf %205, %206 : vector<8x1xf32>
    %c1_96 = arith.constant 1 : index
    %c0_97 = arith.constant 0 : index
    %c0_98 = arith.constant 0 : index
    %208 = vector.load %arg4[%c1_96, %c0_97, %c0_98] : memref<3x8x2xf32, #tpu.memory_space<vmem>>, vector<1x8x2xf32>
    %209 = vector.shape_cast %208 : vector<1x8x2xf32> to vector<8x2xf32>
    %cst_99 = arith.constant 9.99999974E-6 : f32
    %210 = vector.broadcast %cst_99 : f32 to vector<8x1xf32>
    %211 = arith.addf %207, %210 : vector<8x1xf32>
    %212 = math.rsqrt %211 : vector<8x1xf32>
    %213 = vector.extract_strided_slice %209 {offsets = [0, 0], sizes = [8, 1], strides = [1, 1]} : vector<8x2xf32> to vector<8x1xf32>
    %214 = arith.mulf %212, %213 : vector<8x1xf32>
    %215 = vector.extract_strided_slice %209 {offsets = [0, 1], sizes = [8, 1], strides = [1, 1]} : vector<8x2xf32> to vector<8x1xf32>
    %216 = arith.mulf %200, %214 : vector<8x1xf32>
    %217 = arith.subf %215, %216 : vector<8x1xf32>
    %218 = vector.broadcast %214 : vector<8x1xf32> to vector<8x512xf32>
    %219 = arith.mulf %196, %218 : vector<8x512xf32>
    %220 = vector.broadcast %217 : vector<8x1xf32> to vector<8x512xf32>
    %221 = arith.addf %219, %220 : vector<8x512xf32>
    %c0_100 = arith.constant 0 : index
    %c0_101 = arith.constant 0 : index
    %222 = vector.load %arg6[%c0_100, %c0_101] : memref<8x512xf32, #tpu.memory_space<vmem>>, vector<8x512xf32>
    tpu.vector_store %arg6[%c0_100, %c0_101], %221 {strides = array<i32>} : memref<8x512xf32, #tpu.memory_space<vmem>>, vector<8x512xf32>,
    %c0_102 = arith.constant 0 : index
    %c0_103 = arith.constant 0 : index
    %223 = vector.load %arg6[%c0_102, %c0_103] : memref<8x512xf32, #tpu.memory_space<vmem>>, vector<8x512xf32>
    %c17_i32_104 = arith.constant 17 : i32
    %224 = tpu.dynamic_rotate %223 by %c17_i32_104 dim 1 : vector<8x512xf32>, i32 -> vector<8x512xf32>
    %225 = vector.broadcast %21 : vector<1x512xf32> to vector<8x512xf32>
    %226 = arith.mulf %224, %225 : vector<8x512xf32>
    %c0_105 = arith.constant 0 : index
    %c0_106 = arith.constant 0 : index
    %227 = vector.load %arg7[%c0_105, %c0_106] : memref<72x512xf32, #tpu.memory_space<vmem>>, vector<8x512xf32>
    tpu.vector_store %arg7[%c0_105, %c0_106], %226 {strides = array<i32>} : memref<72x512xf32, #tpu.memory_space<vmem>>, vector<8x512xf32>,
    %c16_i32_107 = arith.constant 16 : i32
    %228 = tpu.dynamic_rotate %223 by %c16_i32_107 dim 1 : vector<8x512xf32>, i32 -> vector<8x512xf32>
    %229 = vector.broadcast %8 : vector<1x512xf32> to vector<8x512xf32>
    %230 = arith.mulf %228, %229 : vector<8x512xf32>
    %c8_108 = arith.constant 8 : index
    %c0_109 = arith.constant 0 : index
    %231 = vector.load %arg7[%c8_108, %c0_109] : memref<72x512xf32, #tpu.memory_space<vmem>>, vector<8x512xf32>
    tpu.vector_store %arg7[%c8_108, %c0_109], %230 {strides = array<i32>} : memref<72x512xf32, #tpu.memory_space<vmem>>, vector<8x512xf32>,
    %c15_i32_110 = arith.constant 15 : i32
    %232 = tpu.dynamic_rotate %223 by %c15_i32_110 dim 1 : vector<8x512xf32>, i32 -> vector<8x512xf32>
    %233 = vector.broadcast %22 : vector<1x512xf32> to vector<8x512xf32>
    %234 = arith.mulf %232, %233 : vector<8x512xf32>
    %c16_111 = arith.constant 16 : index
    %c0_112 = arith.constant 0 : index
    %235 = vector.load %arg7[%c16_111, %c0_112] : memref<72x512xf32, #tpu.memory_space<vmem>>, vector<8x512xf32>
    tpu.vector_store %arg7[%c16_111, %c0_112], %234 {strides = array<i32>} : memref<72x512xf32, #tpu.memory_space<vmem>>, vector<8x512xf32>,
    %c1_i32_113 = arith.constant 1 : i32
    %236 = tpu.dynamic_rotate %223 by %c1_i32_113 dim 1 : vector<8x512xf32>, i32 -> vector<8x512xf32>
    %237 = vector.broadcast %16 : vector<1x512xf32> to vector<8x512xf32>
    %238 = arith.mulf %236, %237 : vector<8x512xf32>
    %c24_114 = arith.constant 24 : index
    %c0_115 = arith.constant 0 : index
    %239 = vector.load %arg7[%c24_114, %c0_115] : memref<72x512xf32, #tpu.memory_space<vmem>>, vector<8x512xf32>
    tpu.vector_store %arg7[%c24_114, %c0_115], %238 {strides = array<i32>} : memref<72x512xf32, #tpu.memory_space<vmem>>, vector<8x512xf32>,
    %c32_116 = arith.constant 32 : index
    %c0_117 = arith.constant 0 : index
    %240 = vector.load %arg7[%c32_116, %c0_117] : memref<72x512xf32, #tpu.memory_space<vmem>>, vector<8x512xf32>
    tpu.vector_store %arg7[%c32_116, %c0_117], %223 {strides = array<i32>} : memref<72x512xf32, #tpu.memory_space<vmem>>, vector<8x512xf32>,
    %c511_i32_118 = arith.constant 511 : i32
    %241 = tpu.dynamic_rotate %223 by %c511_i32_118 dim 1 : vector<8x512xf32>, i32 -> vector<8x512xf32>
    %242 = vector.broadcast %20 : vector<1x512xf32> to vector<8x512xf32>
    %243 = arith.mulf %241, %242 : vector<8x512xf32>
    %c40_119 = arith.constant 40 : index
    %c0_120 = arith.constant 0 : index
    %244 = vector.load %arg7[%c40_119, %c0_120] : memref<72x512xf32, #tpu.memory_space<vmem>>, vector<8x512xf32>
    tpu.vector_store %arg7[%c40_119, %c0_120], %243 {strides = array<i32>} : memref<72x512xf32, #tpu.memory_space<vmem>>, vector<8x512xf32>,
    %c497_i32_121 = arith.constant 497 : i32
    %245 = tpu.dynamic_rotate %223 by %c497_i32_121 dim 1 : vector<8x512xf32>, i32 -> vector<8x512xf32>
    %246 = vector.broadcast %23 : vector<1x512xf32> to vector<8x512xf32>
    %247 = arith.mulf %245, %246 : vector<8x512xf32>
    %c48_122 = arith.constant 48 : index
    %c0_123 = arith.constant 0 : index
    %248 = vector.load %arg7[%c48_122, %c0_123] : memref<72x512xf32, #tpu.memory_space<vmem>>, vector<8x512xf32>
    tpu.vector_store %arg7[%c48_122, %c0_123], %247 {strides = array<i32>} : memref<72x512xf32, #tpu.memory_space<vmem>>, vector<8x512xf32>,
    %c496_i32_124 = arith.constant 496 : i32
    %249 = tpu.dynamic_rotate %223 by %c496_i32_124 dim 1 : vector<8x512xf32>, i32 -> vector<8x512xf32>
    %250 = vector.broadcast %12 : vector<1x512xf32> to vector<8x512xf32>
    %251 = arith.mulf %249, %250 : vector<8x512xf32>
    %c56_125 = arith.constant 56 : index
    %c0_126 = arith.constant 0 : index
    %252 = vector.load %arg7[%c56_125, %c0_126] : memref<72x512xf32, #tpu.memory_space<vmem>>, vector<8x512xf32>
    tpu.vector_store %arg7[%c56_125, %c0_126], %251 {strides = array<i32>} : memref<72x512xf32, #tpu.memory_space<vmem>>, vector<8x512xf32>,
    %c495_i32_127 = arith.constant 495 : i32
    %253 = tpu.dynamic_rotate %223 by %c495_i32_127 dim 1 : vector<8x512xf32>, i32 -> vector<8x512xf32>
    %254 = vector.broadcast %24 : vector<1x512xf32> to vector<8x512xf32>
    %255 = arith.mulf %253, %254 : vector<8x512xf32>
    %c64_128 = arith.constant 64 : index
    %c0_129 = arith.constant 0 : index
    %256 = vector.load %arg7[%c64_128, %c0_129] : memref<72x512xf32, #tpu.memory_space<vmem>>, vector<8x512xf32>
    tpu.vector_store %arg7[%c64_128, %c0_129], %255 {strides = array<i32>} : memref<72x512xf32, #tpu.memory_space<vmem>>, vector<8x512xf32>,
    %c2 = arith.constant 2 : index
    %c0_130 = arith.constant 0 : index
    %c0_131 = arith.constant 0 : index
    %257 = vector.load %arg2[%c2, %c0_130, %c0_131] : memref<3x16x72xf32, #tpu.memory_space<vmem>>, vector<1x16x72xf32>
    %258 = vector.shape_cast %257 : vector<1x16x72xf32> to vector<16x72xf32>
    %c0_132 = arith.constant 0 : index
    %c0_133 = arith.constant 0 : index
    %259 = vector.load %arg7[%c0_132, %c0_133] : memref<72x512xf32, #tpu.memory_space<vmem>>, vector<72x512xf32>
    %cst_134 = arith.constant dense<0.000000e+00> : vector<16x512xf32>
    %260 = tpu.matmul %258, %259, %cst_134 {dimension_numbers = #tpu.dot_dimension_numbers<[1], [0], [0], [1], [0, 0, 1, 1], [], []>} : vector<16x72xf32>, vector<72x512xf32>, vector<16x512xf32> -> vector<16x512xf32>
    %cst_135 = arith.constant dense<0.000000e+00> : vector<16xf32>
    %261 = vector.multi_reduction <add>, %260, %cst_135 [1] : vector<16x512xf32> to vector<16xf32>
    %262 = vector.shape_cast %261 : vector<16xf32> to vector<16x1xf32>
    %cst_136 = arith.constant 5.120000e+02 : f32
    %263 = vector.broadcast %cst_136 : f32 to vector<16x1xf32>
    %264 = arith.divf %262, %263 : vector<16x1xf32>
    %265 = arith.mulf %260, %260 : vector<16x512xf32>
    %cst_137 = arith.constant dense<0.000000e+00> : vector<16xf32>
    %266 = vector.multi_reduction <add>, %265, %cst_137 [1] : vector<16x512xf32> to vector<16xf32>
    %267 = vector.shape_cast %266 : vector<16xf32> to vector<16x1xf32>
    %cst_138 = arith.constant 5.120000e+02 : f32
    %268 = vector.broadcast %cst_138 : f32 to vector<16x1xf32>
    %269 = arith.divf %267, %268 : vector<16x1xf32>
    %270 = arith.mulf %264, %264 : vector<16x1xf32>
    %271 = arith.subf %269, %270 : vector<16x1xf32>
    %c2_139 = arith.constant 2 : index
    %c0_140 = arith.constant 0 : index
    %c0_141 = arith.constant 0 : index
    %272 = vector.load %arg3[%c2_139, %c0_140, %c0_141] : memref<3x16x2xf32, #tpu.memory_space<vmem>>, vector<1x16x2xf32>
    %273 = vector.shape_cast %272 : vector<1x16x2xf32> to vector<16x2xf32>
    %cst_142 = arith.constant 9.99999974E-6 : f32
    %274 = vector.broadcast %cst_142 : f32 to vector<16x1xf32>
    %275 = arith.addf %271, %274 : vector<16x1xf32>
    %276 = math.rsqrt %275 : vector<16x1xf32>
    %277 = vector.extract_strided_slice %273 {offsets = [0, 0], sizes = [16, 1], strides = [1, 1]} : vector<16x2xf32> to vector<16x1xf32>
    %278 = arith.mulf %276, %277 : vector<16x1xf32>
    %279 = vector.extract_strided_slice %273 {offsets = [0, 1], sizes = [16, 1], strides = [1, 1]} : vector<16x2xf32> to vector<16x1xf32>
    %280 = arith.mulf %264, %278 : vector<16x1xf32>
    %281 = arith.subf %279, %280 : vector<16x1xf32>
    %282 = vector.broadcast %278 : vector<16x1xf32> to vector<16x512xf32>
    %283 = arith.mulf %260, %282 : vector<16x512xf32>
    %284 = vector.broadcast %281 : vector<16x1xf32> to vector<16x512xf32>
    %285 = arith.addf %283, %284 : vector<16x512xf32>
    %286 = vector.extract_strided_slice %285 {offsets = [0, 0], sizes = [8, 512], strides = [1, 1]} : vector<16x512xf32> to vector<8x512xf32>
    %cst_143 = arith.constant 0.000000e+00 : f32
    %287 = vector.broadcast %cst_143 : f32 to vector<8x512xf32>
    %288 = arith.maximumf %286, %287 : vector<8x512xf32>
    %289 = vector.extract_strided_slice %285 {offsets = [8, 0], sizes = [8, 512], strides = [1, 1]} : vector<16x512xf32> to vector<8x512xf32>
    %290 = arith.addf %288, %289 : vector<8x512xf32>
    %cst_144 = arith.constant 0.000000e+00 : f32
    %291 = vector.broadcast %cst_144 : f32 to vector<8x512xf32>
    %292 = arith.maximumf %290, %291 : vector<8x512xf32>
    %cst_145 = arith.constant dense<0.000000e+00> : vector<8xf32>
    %293 = vector.multi_reduction <add>, %292, %cst_145 [1] : vector<8x512xf32> to vector<8xf32>
    %294 = vector.shape_cast %293 : vector<8xf32> to vector<8x1xf32>
    %cst_146 = arith.constant 5.120000e+02 : f32
    %295 = vector.broadcast %cst_146 : f32 to vector<8x1xf32>
    %296 = arith.divf %294, %295 : vector<8x1xf32>
    %297 = arith.mulf %292, %292 : vector<8x512xf32>
    %cst_147 = arith.constant dense<0.000000e+00> : vector<8xf32>
    %298 = vector.multi_reduction <add>, %297, %cst_147 [1] : vector<8x512xf32> to vector<8xf32>
    %299 = vector.shape_cast %298 : vector<8xf32> to vector<8x1xf32>
    %cst_148 = arith.constant 5.120000e+02 : f32
    %300 = vector.broadcast %cst_148 : f32 to vector<8x1xf32>
    %301 = arith.divf %299, %300 : vector<8x1xf32>
    %302 = arith.mulf %296, %296 : vector<8x1xf32>
    %303 = arith.subf %301, %302 : vector<8x1xf32>
    %c2_149 = arith.constant 2 : index
    %c0_150 = arith.constant 0 : index
    %c0_151 = arith.constant 0 : index
    %304 = vector.load %arg4[%c2_149, %c0_150, %c0_151] : memref<3x8x2xf32, #tpu.memory_space<vmem>>, vector<1x8x2xf32>
    %305 = vector.shape_cast %304 : vector<1x8x2xf32> to vector<8x2xf32>
    %cst_152 = arith.constant 9.99999974E-6 : f32
    %306 = vector.broadcast %cst_152 : f32 to vector<8x1xf32>
    %307 = arith.addf %303, %306 : vector<8x1xf32>
    %308 = math.rsqrt %307 : vector<8x1xf32>
    %309 = vector.extract_strided_slice %305 {offsets = [0, 0], sizes = [8, 1], strides = [1, 1]} : vector<8x2xf32> to vector<8x1xf32>
    %310 = arith.mulf %308, %309 : vector<8x1xf32>
    %311 = vector.extract_strided_slice %305 {offsets = [0, 1], sizes = [8, 1], strides = [1, 1]} : vector<8x2xf32> to vector<8x1xf32>
    %312 = arith.mulf %296, %310 : vector<8x1xf32>
    %313 = arith.subf %311, %312 : vector<8x1xf32>
    %314 = vector.broadcast %310 : vector<8x1xf32> to vector<8x512xf32>
    %315 = arith.mulf %292, %314 : vector<8x512xf32>
    %316 = vector.broadcast %313 : vector<8x1xf32> to vector<8x512xf32>
    %317 = arith.addf %315, %316 : vector<8x512xf32>
    %c0_153 = arith.constant 0 : index
    %c0_154 = arith.constant 0 : index
    %318 = vector.load %arg6[%c0_153, %c0_154] : memref<8x512xf32, #tpu.memory_space<vmem>>, vector<8x512xf32>
    tpu.vector_store %arg6[%c0_153, %c0_154], %317 {strides = array<i32>} : memref<8x512xf32, #tpu.memory_space<vmem>>, vector<8x512xf32>,
    %c0_155 = arith.constant 0 : index
    %c0_156 = arith.constant 0 : index
    %319 = vector.load %arg6[%c0_155, %c0_156] : memref<8x512xf32, #tpu.memory_space<vmem>>, vector<8x256xf32>
    %c0_157 = arith.constant 0 : index
    %c0_158 = arith.constant 0 : index
    %c0_159 = arith.constant 0 : index
    %320 = vector.load %arg5[%c0_157, %c0_158, %c0_159] : memref<2x8x256xf32, #tpu.memory_space<vmem>>, vector<1x8x256xf32>
    %321 = vector.shape_cast %320 : vector<1x8x256xf32> to vector<8x256xf32>
    %322 = vector.shape_cast %319 : vector<8x256xf32> to vector<1x8x256xf32>
    tpu.vector_store %arg5[%c0_157, %c0_158, %c0_159], %322 {strides = array<i32>} : memref<2x8x256xf32, #tpu.memory_space<vmem>>, vector<1x8x256xf32>,
    %c0_160 = arith.constant 0 : index
    %c256_161 = arith.constant 256 : index
    %323 = vector.load %arg6[%c0_160, %c256_161] : memref<8x512xf32, #tpu.memory_space<vmem>>, vector<8x256xf32>
    %c1_162 = arith.constant 1 : index
    %c0_163 = arith.constant 0 : index
    %c0_164 = arith.constant 0 : index
    %324 = vector.load %arg5[%c1_162, %c0_163, %c0_164] : memref<2x8x256xf32, #tpu.memory_space<vmem>>, vector<1x8x256xf32>
    %325 = vector.shape_cast %324 : vector<1x8x256xf32> to vector<8x256xf32>
    %326 = vector.shape_cast %323 : vector<8x256xf32> to vector<1x8x256xf32>
    tpu.vector_store %arg5[%c1_162, %c0_163, %c0_164], %326 {strides = array<i32>} : memref<2x8x256xf32, #tpu.memory_space<vmem>>, vector<1x8x256xf32>,
    return
  }
  func.func @transform_0(%arg0: i32) -> (i32, i32, i32) {
    %c0_i32 = arith.constant 0 : i32
    %c0_i32_0 = arith.constant 0 : i32
    %c0_i32_1 = arith.constant 0 : i32
    %c0_i32_2 = arith.constant 0 : i32
    return %c0_i32, %c0_i32_0, %c0_i32_1 : i32, i32, i32
  }
  func.func @transform_1(%arg0: i32) -> (i32, i32, i32) {
    %c0_i32 = arith.constant 0 : i32
    %c0_i32_0 = arith.constant 0 : i32
    %c0_i32_1 = arith.constant 0 : i32
    %c0_i32_2 = arith.constant 0 : i32
    return %c0_i32, %c0_i32_0, %c0_i32_1 : i32, i32, i32
  }
  func.func @transform_2(%arg0: i32) -> (i32, i32, i32) {
    %c0_i32 = arith.constant 0 : i32
    %c0_i32_0 = arith.constant 0 : i32
    %c0_i32_1 = arith.constant 0 : i32
    %c0_i32_2 = arith.constant 0 : i32
    return %c0_i32, %c0_i32_0, %c0_i32_1 : i32, i32, i32
  }
  func.func @transform_3(%arg0: i32) -> (i32, i32, i32) {
    %c0_i32 = arith.constant 0 : i32
    %c0_i32_0 = arith.constant 0 : i32
    %c0_i32_1 = arith.constant 0 : i32
    %c0_i32_2 = arith.constant 0 : i32
    return %c0_i32, %c0_i32_0, %c0_i32_1 : i32, i32, i32
  }
  func.func @transform_4(%arg0: i32) -> (i32, i32, i32) {
    %c0_i32 = arith.constant 0 : i32
    %c0_i32_0 = arith.constant 0 : i32
    %c0_i32_1 = arith.constant 0 : i32
    %c0_i32_2 = arith.constant 0 : i32
    return %c0_i32, %c0_i32_0, %c0_i32_1 : i32, i32, i32
  }
}

</mosaic_0001>

<llo_original>
// kernel: tpu_custom_call.1
$region0: #{tpu_custom_call.1}
  #allocation0 [shape = 'u32[]', space=smem, size = 0x4, offset = 0x4, fixed_abs, tag = 'smem constant byte address 0x4 - core index']
  #allocation1 [shape = 'u32[144,128]{1,0:T(1,128)}', space=vmem, size = 0x12000, scoped, tag = 'internal scratch']
  #allocation2 [shape = 'f32[8,512]{1,0:T(8,128)}', space=vmem, size = 0x4000, scoped, tag = 'scratch operand']
  #allocation3 [shape = 'f32[72,512]{1,0:T(8,128)}', space=vmem, size = 0x24000, scoped, tag = 'scratch operand']
  %s0 = inlined_call_operand.vmem [shape: f32[2,8,256], index: 0, kind: input, shape index: {}]
  %s1 = inlined_call_operand.vmem [shape: f32[3,16,72], index: 1, kind: input, shape index: {}]
  %s2 = inlined_call_operand.vmem [shape: f32[3,16,2], index: 2, kind: input, shape index: {}]
  %s3 = inlined_call_operand.vmem [shape: f32[3,8,2], index: 3, kind: input, shape index: {}]
  %s4 = inlined_call_operand.hbm [shape: f32[2,8,256], index: 4, kind: output, shape index: {}]
  %s5 = sld [smem:[#allocation0]]
  $region26: #{tpu_custom_call.1} parent=0
    _
  %s7 = ssub.s32 1, %s5
  %s8 = scalar_select 0, %s7, %s5
  $region1: #{tpu_custom_call.1} parent=0
    #allocation4 [shape = 'u8[16384]{0}', space=vmem, size = 0x4000, scoped, tag = 'output window, operand 0, single buffered']
    #allocation5 [shape = 's32[1]{0}', space=sflag, size = 0x4, scoped, tag = 'scoped memory for tpu_custom_call.1']
    %9 = vsyncpa [#allocation5], 0
    // Predicated region
    $region2: #{tpu_custom_call.1} parent=1 // pred_check
      _
    $region3: #{tpu_custom_call.1} parent=1 // pred_check_branch
      %11 = sbr.rel (0) target = $region5
    $region4: #{tpu_custom_call.1} parent=1 // pred_region
      _
    $region5: #{tpu_custom_call.1} parent=1 // pred_fallthru
      _
    // Predicated region
    $region6: #{tpu_custom_call.1} parent=1 // pred_check
      _
    $region7: #{tpu_custom_call.1} parent=1 // pred_check_branch
      %13 = sbr.rel (0) target = $region9
    $region8: #{tpu_custom_call.1} parent=1 // pred_region
      _
    $region9: #{tpu_custom_call.1} parent=1 // pred_fallthru
      _
    // Predicated region
    $region10: #{tpu_custom_call.1} parent=1 // pred_check
      _
    $region11: #{tpu_custom_call.1} parent=1 // pred_check_branch
      %15 = sbr.rel (0) target = $region13
    $region12: #{tpu_custom_call.1} parent=1 // pred_region
      _
    $region13: #{tpu_custom_call.1} parent=1 // pred_fallthru
      _
    // Predicated region
    $region14: #{tpu_custom_call.1} parent=1 // pred_check
      _
    $region15: #{tpu_custom_call.1} parent=1 // pred_check_branch
      %17 = sbr.rel (0) target = $region17
    $region16: #{tpu_custom_call.1} parent=1 // pred_region
      _
    $region17: #{tpu_custom_call.1} parent=1 // pred_fallthru
      _
    %v18 = vlaneseq
    %v19 = vand.u32 %v18, 127
    %v20 = vadd.s32 %v19, 128
    %v21 = vadd.s32 %v19, 256
    %v22 = vadd.s32 %v19, 384
    %v23 = vand.u32 %v19, 255
    %v24 = vand.u32 %v20, 255
    %v25 = vand.u32 %v21, 255
    %v26 = vand.u32 %v22, 255
    %v27 = vand.u32 %v19, 15
    %v28 = vand.u32 %v20, 15
    %v29 = vand.u32 %v21, 15
    %v30 = vand.u32 %v22, 15
    %vm31 = vcmp.ge.s32.totalorder %v23, 16
    %vm32 = vcmp.ge.s32.totalorder %v24, 16
    %vm33 = vcmp.ge.s32.totalorder %v25, 16
    %vm34 = vcmp.ge.s32.totalorder %v26, 16
    %v35 = vsel %vm31, 1, 0
    %v36 = vsel %vm32, 1, 0
    %v37 = vsel %vm33, 1, 0
    %v38 = vsel %vm34, 1, 0
    %v39 = vcvt.s32.f32 %v35
    %v40 = vcvt.s32.f32 %v36
    %v41 = vcvt.s32.f32 %v37
    %v42 = vcvt.s32.f32 %v38
    %vm43 = vcmp.lt.s32.totalorder %v23, 240
    %vm44 = vcmp.lt.s32.totalorder %v24, 240
    %vm45 = vcmp.lt.s32.totalorder %v25, 240
    %vm46 = vcmp.lt.s32.totalorder %v26, 240
    %v47 = vsel %vm43, 1, 0
    %v48 = vsel %vm44, 1, 0
    %v49 = vsel %vm45, 1, 0
    %v50 = vsel %vm46, 1, 0
    %v51 = vcvt.s32.f32 %v47
    %v52 = vcvt.s32.f32 %v48
    %v53 = vcvt.s32.f32 %v49
    %v54 = vcvt.s32.f32 %v50
    %vm55 = vcmp.ge.s32.totalorder %v27, 1
    %vm56 = vcmp.ge.s32.totalorder %v28, 1
    %vm57 = vcmp.ge.s32.totalorder %v29, 1
    %vm58 = vcmp.ge.s32.totalorder %v30, 1
    %v59 = vsel %vm55, 1, 0
    %v60 = vsel %vm56, 1, 0
    %v61 = vsel %vm57, 1, 0
    %v62 = vsel %vm58, 1, 0
    %v63 = vcvt.s32.f32 %v59
    %v64 = vcvt.s32.f32 %v60
    %v65 = vcvt.s32.f32 %v61
    %v66 = vcvt.s32.f32 %v62
    %vm67 = vcmp.lt.s32.totalorder %v27, 15
    %vm68 = vcmp.lt.s32.totalorder %v28, 15
    %vm69 = vcmp.lt.s32.totalorder %v29, 15
    %vm70 = vcmp.lt.s32.totalorder %v30, 15
    %v71 = vsel %vm67, 1, 0
    %v72 = vsel %vm68, 1, 0
    %v73 = vsel %vm69, 1, 0
    %v74 = vsel %vm70, 1, 0
    %v75 = vcvt.s32.f32 %v71
    %v76 = vcvt.s32.f32 %v72
    %v77 = vcvt.s32.f32 %v73
    %v78 = vcvt.s32.f32 %v74
    %v79 = vmul.f32 %v39, %v63
    %v80 = vmul.f32 %v40, %v64
    %v81 = vmul.f32 %v41, %v65
    %v82 = vmul.f32 %v42, %v66
    %v83 = vmul.f32 %v39, %v75
    %v84 = vmul.f32 %v40, %v76
    %v85 = vmul.f32 %v41, %v77
    %v86 = vmul.f32 %v42, %v78
    %v87 = vmul.f32 %v51, %v63
    %v88 = vmul.f32 %v52, %v64
    %v89 = vmul.f32 %v53, %v65
    %v90 = vmul.f32 %v54, %v66
    %v91 = vmul.f32 %v51, %v75
    %v92 = vmul.f32 %v52, %v76
    %v93 = vmul.f32 %v53, %v77
    %v94 = vmul.f32 %v54, %v78
    %v95 = vld [vmem:[%s0] sm:$0xff]
    %v96 = vld [vmem:[%s0 + $0x8] sm:$0xff]
    %97 = vst [vmem:[#allocation2] sm:$0xff] %v95
    %98 = vst [vmem:[#allocation2 + $0x8] sm:$0xff] %v96
    %s99 = scalar_lea.vmem %s0, 16
    %v100 = vld [vmem:[%s99] sm:$0xff]
    %v101 = vld [vmem:[%s99 + $0x8] sm:$0xff]
    %102 = vst [vmem:[#allocation2 + $0x10] sm:$0xff] %v100
    %103 = vst [vmem:[#allocation2 + $0x18] sm:$0xff] %v101
    %v104 = vld [vmem:[#allocation2] sm:$0xff]
    %v105 = vld [vmem:[#allocation2 + $0x8] sm:$0xff]
    %v106 = vld [vmem:[#allocation2 + $0x10] sm:$0xff]
    %v107 = vld [vmem:[#allocation2 + $0x18] sm:$0xff]
    %108 = vrot.lane.b32.xlu0 %v104, 17
    %v109 = vpop.permute.xlu0 %108
    %110 = vrot.lane.b32.xlu0 %v105, 17
    %v111 = vpop.permute.xlu0 %110
    %112 = vrot.lane.b32.xlu0 %v106, 17
    %v113 = vpop.permute.xlu0 %112
    %114 = vrot.lane.b32.xlu0 %v107, 17
    %v115 = vpop.permute.xlu0 %114
    %vm116 = vcmp.lt.s32.totalorder %v19, 17
    %v117 = vsel %vm116, %v113, %v115
    %v118 = vsel %vm116, %v111, %v113
    %v119 = vsel %vm116, %v109, %v111
    %v120 = vsel %vm116, %v115, %v109
    %v121 = vmul.f32 %v120, %v79
    %v122 = vmul.f32 %v119, %v80
    %v123 = vmul.f32 %v118, %v81
    %v124 = vmul.f32 %v117, %v82
    %125 = vst [vmem:[#allocation3] sm:$0xff] %v121
    %126 = vst [vmem:[#allocation3 + $0x8] sm:$0xff] %v122
    %127 = vst [vmem:[#allocation3 + $0x10] sm:$0xff] %v123
    %128 = vst [vmem:[#allocation3 + $0x18] sm:$0xff] %v124
    %129 = vrot.lane.b32.xlu0 %v104, 16
    %v130 = vpop.permute.xlu0 %129
    %131 = vrot.lane.b32.xlu0 %v105, 16
    %v132 = vpop.permute.xlu0 %131
    %133 = vrot.lane.b32.xlu0 %v106, 16
    %v134 = vpop.permute.xlu0 %133
    %135 = vrot.lane.b32.xlu0 %v107, 16
    %v136 = vpop.permute.xlu0 %135
    %vm137 = vcmp.lt.s32.totalorder %v19, 16
    %v138 = vsel %vm137, %v134, %v136
    %v139 = vsel %vm137, %v132, %v134
    %v140 = vsel %vm137, %v130, %v132
    %v141 = vsel %vm137, %v136, %v130
    %v142 = vmul.f32 %v141, %v39
    %v143 = vmul.f32 %v140, %v40
    %v144 = vmul.f32 %v139, %v41
    %v145 = vmul.f32 %v138, %v42
    %146 = vst [vmem:[#allocation3 + $0x20] sm:$0xff] %v142
    %147 = vst [vmem:[#allocation3 + $0x28] sm:$0xff] %v143
    %148 = vst [vmem:[#allocation3 + $0x30] sm:$0xff] %v144
    %149 = vst [vmem:[#allocation3 + $0x38] sm:$0xff] %v145
    %150 = vrot.lane.b32.xlu0 %v104, 15
    %v151 = vpop.permute.xlu0 %150
    %152 = vrot.lane.b32.xlu0 %v105, 15
    %v153 = vpop.permute.xlu0 %152
    %154 = vrot.lane.b32.xlu0 %v106, 15
    %v155 = vpop.permute.xlu0 %154
    %156 = vrot.lane.b32.xlu0 %v107, 15
    %v157 = vpop.permute.xlu0 %156
    %vm158 = vcmp.lt.s32.totalorder %v19, 15
    %v159 = vsel %vm158, %v155, %v157
    %v160 = vsel %vm158, %v153, %v155
    %v161 = vsel %vm158, %v151, %v153
    %v162 = vsel %vm158, %v157, %v151
    %v163 = vmul.f32 %v162, %v83
    %v164 = vmul.f32 %v161, %v84
    %v165 = vmul.f32 %v160, %v85
    %v166 = vmul.f32 %v159, %v86
    %167 = vst [vmem:[#allocation3 + $0x40] sm:$0xff] %v163
    %168 = vst [vmem:[#allocation3 + $0x48] sm:$0xff] %v164
    %169 = vst [vmem:[#allocation3 + $0x50] sm:$0xff] %v165
    %170 = vst [vmem:[#allocation3 + $0x58] sm:$0xff] %v166
    %171 = vrot.lane.b32.xlu0 %v104, 1
    %v172 = vpop.permute.xlu0 %171
    %173 = vrot.lane.b32.xlu0 %v105, 1
    %v174 = vpop.permute.xlu0 %173
    %175 = vrot.lane.b32.xlu0 %v106, 1
    %v176 = vpop.permute.xlu0 %175
    %177 = vrot.lane.b32.xlu0 %v107, 1
    %v178 = vpop.permute.xlu0 %177
    %vm179 = vcmp.lt.s32.totalorder %v19, 1
    %v180 = vsel %vm179, %v176, %v178
    %v181 = vsel %vm179, %v174, %v176
    %v182 = vsel %vm179, %v172, %v174
    %v183 = vsel %vm179, %v178, %v172
    %v184 = vmul.f32 %v183, %v63
    %v185 = vmul.f32 %v182, %v64
    %v186 = vmul.f32 %v181, %v65
    %v187 = vmul.f32 %v180, %v66
    %188 = vst [vmem:[#allocation3 + $0x60] sm:$0xff] %v184
    %189 = vst [vmem:[#allocation3 + $0x68] sm:$0xff] %v185
    %190 = vst [vmem:[#allocation3 + $0x70] sm:$0xff] %v186
    %191 = vst [vmem:[#allocation3 + $0x78] sm:$0xff] %v187
    %192 = vst [vmem:[#allocation3 + $0x80] sm:$0xff] %v104
    %193 = vst [vmem:[#allocation3 + $0x88] sm:$0xff] %v105
    %194 = vst [vmem:[#allocation3 + $0x90] sm:$0xff] %v106
    %195 = vst [vmem:[#allocation3 + $0x98] sm:$0xff] %v107
    %196 = vrot.lane.b32.xlu0 %v104, 127
    %v197 = vpop.permute.xlu0 %196
    %198 = vrot.lane.b32.xlu0 %v105, 127
    %v199 = vpop.permute.xlu0 %198
    %200 = vrot.lane.b32.xlu0 %v106, 127
    %v201 = vpop.permute.xlu0 %200
    %202 = vrot.lane.b32.xlu0 %v107, 127
    %v203 = vpop.permute.xlu0 %202
    %vm204 = vcmp.lt.s32.totalorder %v19, 127
    %v205 = vsel %vm204, %v201, %v203
    %v206 = vsel %vm204, %v199, %v201
    %v207 = vsel %vm204, %v197, %v199
    %v208 = vsel %vm204, %v203, %v197
    %v209 = vmul.f32 %v207, %v75
    %v210 = vmul.f32 %v206, %v76
    %v211 = vmul.f32 %v205, %v77
    %v212 = vmul.f32 %v208, %v78
    %213 = vst [vmem:[#allocation3 + $0xa0] sm:$0xff] %v209
    %214 = vst [vmem:[#allocation3 + $0xa8] sm:$0xff] %v210
    %215 = vst [vmem:[#allocation3 + $0xb0] sm:$0xff] %v211
    %216 = vst [vmem:[#allocation3 + $0xb8] sm:$0xff] %v212
    %217 = vrot.lane.b32.xlu0 %v104, 113
    %v218 = vpop.permute.xlu0 %217
    %219 = vrot.lane.b32.xlu0 %v105, 113
    %v220 = vpop.permute.xlu0 %219
    %221 = vrot.lane.b32.xlu0 %v106, 113
    %v222 = vpop.permute.xlu0 %221
    %223 = vrot.lane.b32.xlu0 %v107, 113
    %v224 = vpop.permute.xlu0 %223
    %vm225 = vcmp.lt.s32.totalorder %v19, 113
    %v226 = vsel %vm225, %v222, %v224
    %v227 = vsel %vm225, %v220, %v222
    %v228 = vsel %vm225, %v218, %v220
    %v229 = vsel %vm225, %v224, %v218
    %v230 = vmul.f32 %v228, %v87
    %v231 = vmul.f32 %v227, %v88
    %v232 = vmul.f32 %v226, %v89
    %v233 = vmul.f32 %v229, %v90
    %234 = vst [vmem:[#allocation3 + $0xc0] sm:$0xff] %v230
    %235 = vst [vmem:[#allocation3 + $0xc8] sm:$0xff] %v231
    %236 = vst [vmem:[#allocation3 + $0xd0] sm:$0xff] %v232
    %237 = vst [vmem:[#allocation3 + $0xd8] sm:$0xff] %v233
    %238 = vrot.lane.b32.xlu0 %v104, 112
    %v239 = vpop.permute.xlu0 %238
    %240 = vrot.lane.b32.xlu0 %v105, 112
    %v241 = vpop.permute.xlu0 %240
    %242 = vrot.lane.b32.xlu0 %v106, 112
    %v243 = vpop.permute.xlu0 %242
    %244 = vrot.lane.b32.xlu0 %v107, 112
    %v245 = vpop.permute.xlu0 %244
    %vm246 = vcmp.lt.s32.totalorder %v19, 112
    %v247 = vsel %vm246, %v243, %v245
    %v248 = vsel %vm246, %v241, %v243
    %v249 = vsel %vm246, %v239, %v241
    %v250 = vsel %vm246, %v245, %v239
    %v251 = vmul.f32 %v249, %v51
    %v252 = vmul.f32 %v248, %v52
    %v253 = vmul.f32 %v247, %v53
    %v254 = vmul.f32 %v250, %v54
    %255 = vst [vmem:[#allocation3 + $0xe0] sm:$0xff] %v251
    %256 = vst [vmem:[#allocation3 + $0xe8] sm:$0xff] %v252
    %257 = vst [vmem:[#allocation3 + $0xf0] sm:$0xff] %v253
    %258 = vst [vmem:[#allocation3 + $0xf8] sm:$0xff] %v254
    %259 = vrot.lane.b32.xlu0 %v104, 111
    %v260 = vpop.permute.xlu0 %259
    %261 = vrot.lane.b32.xlu0 %v105, 111
    %v262 = vpop.permute.xlu0 %261
    %263 = vrot.lane.b32.xlu0 %v106, 111
    %v264 = vpop.permute.xlu0 %263
    %265 = vrot.lane.b32.xlu0 %v107, 111
    %v266 = vpop.permute.xlu0 %265
    %vm267 = vcmp.lt.s32.totalorder %v19, 111
    %v268 = vsel %vm267, %v264, %v266
    %v269 = vsel %vm267, %v262, %v264
    %v270 = vsel %vm267, %v260, %v262
    %v271 = vsel %vm267, %v266, %v260
    %v272 = vmul.f32 %v270, %v91
    %v273 = vmul.f32 %v269, %v92
    %v274 = vmul.f32 %v268, %v93
    %v275 = vmul.f32 %v271, %v94
    %276 = vst [vmem:[#allocation3 + $0x100] sm:$0xff] %v272
    %277 = vst [vmem:[#allocation3 + $0x108] sm:$0xff] %v273
    %278 = vst [vmem:[#allocation3 + $0x110] sm:$0xff] %v274
    %279 = vst [vmem:[#allocation3 + $0x118] sm:$0xff] %v275
    %v280 = vld [vmem:[%s1] sm:$0xff]
    %v281 = vld [vmem:[%s1 + $0x8] sm:$0xff]
    %v282 = vld [vmem:[#allocation3] sm:$0xff]
    %v283 = vld [vmem:[#allocation3 + $0x8] sm:$0xff]
    %v284 = vld [vmem:[#allocation3 + $0x10] sm:$0xff]
    %v285 = vld [vmem:[#allocation3 + $0x18] sm:$0xff]
    %v286 = vld [vmem:[#allocation3 + $0x20] sm:$0xff]
    %v287 = vld [vmem:[#allocation3 + $0x28] sm:$0xff]
    %v288 = vld [vmem:[#allocation3 + $0x30] sm:$0xff]
    %v289 = vld [vmem:[#allocation3 + $0x38] sm:$0xff]
    %v290 = vld [vmem:[#allocation3 + $0x40] sm:$0xff]
    %v291 = vld [vmem:[#allocation3 + $0x48] sm:$0xff]
    %v292 = vld [vmem:[#allocation3 + $0x50] sm:$0xff]
    %v293 = vld [vmem:[#allocation3 + $0x58] sm:$0xff]
    %v294 = vld [vmem:[#allocation3 + $0x60] sm:$0xff]
    %v295 = vld [vmem:[#allocation3 + $0x68] sm:$0xff]
    %v296 = vld [vmem:[#allocation3 + $0x70] sm:$0xff]
    %v297 = vld [vmem:[#allocation3 + $0x78] sm:$0xff]
    %v298 = vld [vmem:[#allocation3 + $0x80] sm:$0xff]
    %v299 = vld [vmem:[#allocation3 + $0x88] sm:$0xff]
    %v300 = vld [vmem:[#allocation3 + $0x90] sm:$0xff]
    %v301 = vld [vmem:[#allocation3 + $0x98] sm:$0xff]
    %v302 = vld [vmem:[#allocation3 + $0xa0] sm:$0xff]
    %v303 = vld [vmem:[#allocation3 + $0xa8] sm:$0xff]
    %v304 = vld [vmem:[#allocation3 + $0xb0] sm:$0xff]
    %v305 = vld [vmem:[#allocation3 + $0xb8] sm:$0xff]
    %v306 = vld [vmem:[#allocation3 + $0xc0] sm:$0xff]
    %v307 = vld [vmem:[#allocation3 + $0xc8] sm:$0xff]
    %v308 = vld [vmem:[#allocation3 + $0xd0] sm:$0xff]
    %v309 = vld [vmem:[#allocation3 + $0xd8] sm:$0xff]
    %v310 = vld [vmem:[#allocation3 + $0xe0] sm:$0xff]
    %v311 = vld [vmem:[#allocation3 + $0xe8] sm:$0xff]
    %v312 = vld [vmem:[#allocation3 + $0xf0] sm:$0xff]
    %v313 = vld [vmem:[#allocation3 + $0xf8] sm:$0xff]
    %v314 = vld [vmem:[#allocation3 + $0x100] sm:$0xff]
    %v315 = vld [vmem:[#allocation3 + $0x108] sm:$0xff]
    %v316 = vld [vmem:[#allocation3 + $0x110] sm:$0xff]
    %v317 = vld [vmem:[#allocation3 + $0x118] sm:$0xff]
    %vm318 = vcmask 588800
    %v320 = vsel %vm318, %v280, 0
    %v323 = vsel %vm318, %v281, 0
    %325 = vmatprep.subr.mxu0 %v283
    %326 = vmatpush1.msra.mxu0 %v282
    %327 = vmatprep.subr.mxu0 %v287
    %328 = vmatpush1.msra.mxu0 %v286
    %329 = vmatprep.subr.mxu0 %v291
    %330 = vmatpush1.msra.mxu0 %v290
    %331 = vmatprep.subr.mxu0 %v295
    %332 = vmatpush1.msra.mxu0 %v294
    %333 = vmatprep.subr.mxu0 %v299
    %334 = vmatpush1.msra.mxu0 %v298
    %335 = vmatprep.subr.mxu0 %v303
    %336 = vmatpush1.msra.mxu0 %v302
    %337 = vmatprep.subr.mxu0 %v307
    %338 = vmatpush1.msra.mxu0 %v306
    %339 = vmatprep.subr.mxu0 %v311
    %340 = vmatpush1.msra.mxu0 %v310
    %341 = vmatprep.subr.mxu0 %v315
    %342 = vmatpush1.msra.mxu0 %v314
    %343 = vmatprep.subr.mxu0 0.0
    %344 = vmatpush1.msra.mxu0 0.0
    %345 = vmatprep.subr.mxu0 0.0
    %346 = vmatpush1.msra.mxu0 0.0
    %347 = vmatprep.subr.mxu0 0.0
    %348 = vmatpush1.msra.mxu0 0.0
    %349 = vmatprep.subr.mxu0 0.0
    %350 = vmatpush1.msra.mxu0 0.0
    %351 = vmatprep.subr.mxu0 0.0
    %352 = vmatpush1.msra.mxu0 0.0
    %353 = vmatprep.subr.mxu0 0.0
    %354 = vmatpush1.msra.mxu0 0.0
    %355 = vmatprep.subr.mxu0 0.0
    %356 = vmatpush1.msra.mxu0 0.0
    %357 = vmatprep.subr.mxu0 0.0
    %358 = vmatpush1.msra.mxu0 0.0
    %359 = vmatprep.subr.mxu0 0.0
    %360 = vmatpush1.msra.mxu0 0.0
    %361 = vmatprep.subr.mxu0 0.0
    %362 = vmatpush1.msra.mxu0 0.0
    %363 = vmatprep.subr.mxu0 0.0
    %364 = vmatpush1.msra.mxu0 0.0
    %365 = vmatprep.subr.mxu0 0.0
    %366 = vmatpush1.msra.mxu0 0.0
    %367 = vmatprep.subr.mxu0 0.0
    %368 = vmatpush1.msra.mxu0 0.0
    %369 = vmatprep.subr.mxu0 0.0
    %370 = vmatpush1.msra.mxu0 0.0
    %371 = vmatprep.subr.mxu0 0.0
    %372 = vmatpush1.msra.mxu0 0.0
    %373 = vmatprep.subr.mxu0 0.0
    %374 = vmatpush1.msra.mxu0 0.0
    %375 = vmatprep.subr.mxu0 0.0
    %376 = vmatpush1.msra.mxu0 0.0
    %377 = vmatprep.subr.mxu0 0.0
    %378 = vmatpush1.msra.mxu0 0.0
    %379 = vmatprep.subr.mxu0 0.0
    %380 = vmatpush1.msra.mxu0 0.0
    %381 = vmatprep.subr.mxu0 0.0
    %382 = vmatpush1.msra.mxu0 0.0
    %383 = vmatprep.subr.mxu0 0.0
    %384 = vmatpush1.msra.mxu0 0.0
    %385 = vmatprep.subr.mxu0 0.0
    %386 = vmatpush1.msra.mxu0 0.0
    %387 = vmatprep.subr.mxu0 0.0
    %388 = vmatpush1.msra.mxu0 0.0
    %389 = vmatprep.mubr.f32.mxu0 0.0
    %390 = vmatmul.mubr.f32.gmra.mrb[0].mxu0 %v320
    %v391 = vpop.f32.mrb[0].mxu0
    %v392 = vadd.f32 0.0, %v391
    %v393 = vpop.f32.mrb[0].mxu0
    %v394 = vadd.f32 0.0, %v393
    %395 = vmatprep.mubr.f32.mxu0 0.0
    %396 = vmatmul.mubr.f32.gmra.mrb[0].mxu0 %v323
    %v397 = vpop.f32.mrb[0].mxu0
    %v398 = vadd.f32 0.0, %v397
    %v399 = vpop.f32.mrb[0].mxu0
    %v400 = vadd.f32 0.0, %v399
    %401 = vdwg.mxu0
    %402 = vmatprep.subr.mxu0 %v285
    %403 = vmatpush1.msra.mxu0 %v284
    %404 = vmatprep.subr.mxu0 %v289
    %405 = vmatpush1.msra.mxu0 %v288
    %406 = vmatprep.subr.mxu0 %v293
    %407 = vmatpush1.msra.mxu0 %v292
    %408 = vmatprep.subr.mxu0 %v297
    %409 = vmatpush1.msra.mxu0 %v296
    %410 = vmatprep.subr.mxu0 %v301
    %411 = vmatpush1.msra.mxu0 %v300
    %412 = vmatprep.subr.mxu0 %v305
    %413 = vmatpush1.msra.mxu0 %v304
    %414 = vmatprep.subr.mxu0 %v309
    %415 = vmatpush1.msra.mxu0 %v308
    %416 = vmatprep.subr.mxu0 %v313
    %417 = vmatpush1.msra.mxu0 %v312
    %418 = vmatprep.subr.mxu0 %v317
    %419 = vmatpush1.msra.mxu0 %v316
    %420 = vmatprep.subr.mxu0 0.0
    %421 = vmatpush1.msra.mxu0 0.0
    %422 = vmatprep.subr.mxu0 0.0
    %423 = vmatpush1.msra.mxu0 0.0
    %424 = vmatprep.subr.mxu0 0.0
    %425 = vmatpush1.msra.mxu0 0.0
    %426 = vmatprep.subr.mxu0 0.0
    %427 = vmatpush1.msra.mxu0 0.0
    %428 = vmatprep.subr.mxu0 0.0
    %429 = vmatpush1.msra.mxu0 0.0
    %430 = vmatprep.subr.mxu0 0.0
    %431 = vmatpush1.msra.mxu0 0.0
    %432 = vmatprep.subr.mxu0 0.0
    %433 = vmatpush1.msra.mxu0 0.0
    %434 = vmatprep.subr.mxu0 0.0
    %435 = vmatpush1.msra.mxu0 0.0
    %436 = vmatprep.subr.mxu0 0.0
    %437 = vmatpush1.msra.mxu0 0.0
    %438 = vmatprep.subr.mxu0 0.0
    %439 = vmatpush1.msra.mxu0 0.0
    %440 = vmatprep.subr.mxu0 0.0
    %441 = vmatpush1.msra.mxu0 0.0
    %442 = vmatprep.subr.mxu0 0.0
    %443 = vmatpush1.msra.mxu0 0.0
    %444 = vmatprep.subr.mxu0 0.0
    %445 = vmatpush1.msra.mxu0 0.0
    %446 = vmatprep.subr.mxu0 0.0
    %447 = vmatpush1.msra.mxu0 0.0
    %448 = vmatprep.subr.mxu0 0.0
    %449 = vmatpush1.msra.mxu0 0.0
    %450 = vmatprep.subr.mxu0 0.0
    %451 = vmatpush1.msra.mxu0 0.0
    %452 = vmatprep.subr.mxu0 0.0
    %453 = vmatpush1.msra.mxu0 0.0
    %454 = vmatprep.subr.mxu0 0.0
    %455 = vmatpush1.msra.mxu0 0.0
    %456 = vmatprep.subr.mxu0 0.0
    %457 = vmatpush1.msra.mxu0 0.0
    %458 = vmatprep.subr.mxu0 0.0
    %459 = vmatpush1.msra.mxu0 0.0
    %460 = vmatprep.subr.mxu0 0.0
    %461 = vmatpush1.msra.mxu0 0.0
    %462 = vmatprep.subr.mxu0 0.0
    %463 = vmatpush1.msra.mxu0 0.0
    %464 = vmatprep.subr.mxu0 0.0
    %465 = vmatpush1.msra.mxu0 0.0
    %466 = vmatprep.mubr.f32.mxu0 0.0
    %467 = vmatmul.mubr.f32.gmra.mrb[0].mxu0 %v320
    %v468 = vpop.f32.mrb[0].mxu0
    %v469 = vadd.f32 0.0, %v468
    %v470 = vpop.f32.mrb[0].mxu0
    %v471 = vadd.f32 0.0, %v470
    %472 = vmatprep.mubr.f32.mxu0 0.0
    %473 = vmatmul.mubr.f32.gmra.mrb[0].mxu0 %v323
    %v474 = vpop.f32.mrb[0].mxu0
    %v475 = vadd.f32 0.0, %v474
    %v476 = vpop.f32.mrb[0].mxu0
    %v477 = vadd.f32 0.0, %v476
    %478 = vdwg.mxu0
    %v479 = vadd.f32 %v392, %v394
    %v480 = vadd.f32 %v479, %v469
    %v481 = vadd.f32 %v480, %v471
    %482 = vadd.xlane.f32.xlu0 %v481
    %v483 = vpop.xlane.xlu0 %482
    %v484 = vadd.f32 %v398, %v400
    %v485 = vadd.f32 %v484, %v475
    %v486 = vadd.f32 %v485, %v477
    %487 = vadd.xlane.f32.xlu0 %v486
    %v488 = vpop.xlane.xlu0 %487
    %v489 = vrcp.pop 512.0
    %v490 = vmul.f32 %v483, %v489
    %v491 = vmul.f32 %v488, %v489
    %v492 = vmul.f32 %v392, %v392
    %v493 = vmul.f32 %v394, %v394
    %v494 = vmul.f32 %v469, %v469
    %v495 = vmul.f32 %v471, %v471
    %v496 = vmul.f32 %v398, %v398
    %v497 = vmul.f32 %v400, %v400
    %v498 = vmul.f32 %v475, %v475
    %v499 = vmul.f32 %v477, %v477
    %v500 = vadd.f32 %v492, %v493
    %v501 = vadd.f32 %v500, %v494
    %v502 = vadd.f32 %v501, %v495
    %503 = vadd.xlane.f32.xlu0 %v502
    %v504 = vpop.xlane.xlu0 %503
    %v505 = vadd.f32 %v496, %v497
    %v506 = vadd.f32 %v505, %v498
    %v507 = vadd.f32 %v506, %v499
    %508 = vadd.xlane.f32.xlu0 %v507
    %v509 = vpop.xlane.xlu0 %508
    %v510 = vmul.f32 %v504, %v489
    %v511 = vmul.f32 %v509, %v489
    %v512 = vmul.f32 %v490, %v490
    %v513 = vmul.f32 %v491, %v491
    %v514 = vsub.f32 %v510, %v512
    %v515 = vsub.f32 %v511, %v513
    %v516 = vld [vmem:[%s2] sm:$0xff]
    %v517 = vld [vmem:[%s2 + $0x8] sm:$0xff]
    %v518 = vadd.f32 %v514, 1e-05
    %v519 = vadd.f32 %v515, 1e-05
    %v520 = vrsqrt.pop %v518
    %v521 = vrsqrt.pop %v519
    %v522 = vmul.f32 %v520, %v516
    %v523 = vmul.f32 %v521, %v517
    %v524 = vmul.f32 %v490, %v522
    %v525 = vmul.f32 %v491, %v523
    %528 = vrot.lane.b32.xlu0 %v524, 1
    %v529 = vpop.permute.xlu0 %528
    %530 = vrot.lane.b32.xlu0 %v525, 1
    %v531 = vpop.permute.xlu0 %530
    %v534 = vsub.f32 %v516, %v529
    %v535 = vsub.f32 %v517, %v531
    %537 = vset.pattern.permute.xlu0 0
    %538 = vperm.xlu0 %537, %v522
    %v539 = vpop.permute.xlu0 %538
    %542 = vset.pattern.permute.xlu0 0
    %543 = vperm.xlu0 %542, %v523
    %v544 = vpop.permute.xlu0 %543
    %v546 = vmul.f32 %v392, %v539
    %v547 = vmul.f32 %v394, %v539
    %v548 = vmul.f32 %v469, %v539
    %v549 = vmul.f32 %v471, %v539
    %v550 = vmul.f32 %v398, %v544
    %v551 = vmul.f32 %v400, %v544
    %v552 = vmul.f32 %v475, %v544
    %v553 = vmul.f32 %v477, %v544
    %555 = vset.pattern.permute.xlu0 1
    %556 = vperm.xlu0 %555, %v534
    %v557 = vpop.permute.xlu0 %556
    %560 = vset.pattern.permute.xlu0 1
    %561 = vperm.xlu0 %560, %v535
    %v562 = vpop.permute.xlu0 %561
    %v564 = vadd.f32 %v546, %v557
    %v565 = vadd.f32 %v547, %v557
    %v566 = vadd.f32 %v548, %v557
    %v567 = vadd.f32 %v549, %v557
    %v568 = vadd.f32 %v550, %v562
    %v569 = vadd.f32 %v551, %v562
    %v570 = vadd.f32 %v552, %v562
    %v571 = vadd.f32 %v553, %v562
    %v572 = vmax.f32 %v564, 0.0
    %v573 = vmax.f32 %v565, 0.0
    %v574 = vmax.f32 %v566, 0.0
    %v575 = vmax.f32 %v567, 0.0
    %v576 = vadd.f32 %v572, %v568
    %v577 = vadd.f32 %v573, %v569
    %v578 = vadd.f32 %v574, %v570
    %v579 = vadd.f32 %v575, %v571
    %v580 = vmax.f32 %v576, 0.0
    %v581 = vmax.f32 %v577, 0.0
    %v582 = vmax.f32 %v578, 0.0
    %v583 = vmax.f32 %v579, 0.0
    %v584 = vadd.f32 %v580, %v581
    %v585 = vadd.f32 %v584, %v582
    %v586 = vadd.f32 %v585, %v583
    %587 = vadd.xlane.f32.xlu0 %v586
    %v588 = vpop.xlane.xlu0 %587
    %v589 = vmul.f32 %v588, %v489
    %v590 = vmul.f32 %v580, %v580
    %v591 = vmul.f32 %v581, %v581
    %v592 = vmul.f32 %v582, %v582
    %v593 = vmul.f32 %v583, %v583
    %v594 = vadd.f32 %v590, %v591
    %v595 = vadd.f32 %v594, %v592
    %v596 = vadd.f32 %v595, %v593
    %597 = vadd.xlane.f32.xlu0 %v596
    %v598 = vpop.xlane.xlu0 %597
    %v599 = vmul.f32 %v598, %v489
    %v600 = vmul.f32 %v589, %v589
    %v601 = vsub.f32 %v599, %v600
    %v602 = vld [vmem:[%s3] sm:$0xff]
    %v603 = vadd.f32 %v601, 1e-05
    %v604 = vrsqrt.pop %v603
    %v605 = vmul.f32 %v604, %v602
    %v606 = vmul.f32 %v589, %v605
    %608 = vrot.lane.b32.xlu0 %v606, 1
    %v609 = vpop.permute.xlu0 %608
    %v611 = vsub.f32 %v602, %v609
    %613 = vset.pattern.permute.xlu0 0
    %614 = vperm.xlu0 %613, %v605
    %v615 = vpop.permute.xlu0 %614
    %v617 = vmul.f32 %v580, %v615
    %v618 = vmul.f32 %v581, %v615
    %v619 = vmul.f32 %v582, %v615
    %v620 = vmul.f32 %v583, %v615
    %622 = vset.pattern.permute.xlu0 1
    %623 = vperm.xlu0 %622, %v611
    %v624 = vpop.permute.xlu0 %623
    %v626 = vadd.f32 %v617, %v624
    %v627 = vadd.f32 %v618, %v624
    %v628 = vadd.f32 %v619, %v624
    %v629 = vadd.f32 %v620, %v624
    %630 = vst [vmem:[#allocation2] sm:$0xff] %v626
    %631 = vst [vmem:[#allocation2 + $0x8] sm:$0xff] %v627
    %632 = vst [vmem:[#allocation2 + $0x10] sm:$0xff] %v628
    %633 = vst [vmem:[#allocation2 + $0x18] sm:$0xff] %v629
    %v634 = vld [vmem:[#allocation2] sm:$0xff]
    %v635 = vld [vmem:[#allocation2 + $0x8] sm:$0xff]
    %v636 = vld [vmem:[#allocation2 + $0x10] sm:$0xff]
    %v637 = vld [vmem:[#allocation2 + $0x18] sm:$0xff]
    %638 = vrot.lane.b32.xlu0 %v634, 17
    %v639 = vpop.permute.xlu0 %638
    %640 = vrot.lane.b32.xlu0 %v635, 17
    %v641 = vpop.permute.xlu0 %640
    %642 = vrot.lane.b32.xlu0 %v636, 17
    %v643 = vpop.permute.xlu0 %642
    %644 = vrot.lane.b32.xlu0 %v637, 17
    %v645 = vpop.permute.xlu0 %644
    %v646 = vsel %vm116, %v643, %v645
    %v647 = vsel %vm116, %v641, %v643
    %v648 = vsel %vm116, %v639, %v641
    %v649 = vsel %vm116, %v645, %v639
    %v650 = vmul.f32 %v649, %v79
    %v651 = vmul.f32 %v648, %v80
    %v652 = vmul.f32 %v647, %v81
    %v653 = vmul.f32 %v646, %v82
    %654 = vst [vmem:[#allocation3] sm:$0xff] %v650
    %655 = vst [vmem:[#allocation3 + $0x8] sm:$0xff] %v651
    %656 = vst [vmem:[#allocation3 + $0x10] sm:$0xff] %v652
    %657 = vst [vmem:[#allocation3 + $0x18] sm:$0xff] %v653
    %658 = vrot.lane.b32.xlu0 %v634, 16
    %v659 = vpop.permute.xlu0 %658
    %660 = vrot.lane.b32.xlu0 %v635, 16
    %v661 = vpop.permute.xlu0 %660
    %662 = vrot.lane.b32.xlu0 %v636, 16
    %v663 = vpop.permute.xlu0 %662
    %664 = vrot.lane.b32.xlu0 %v637, 16
    %v665 = vpop.permute.xlu0 %664
    %v666 = vsel %vm137, %v663, %v665
    %v667 = vsel %vm137, %v661, %v663
    %v668 = vsel %vm137, %v659, %v661
    %v669 = vsel %vm137, %v665, %v659
    %v670 = vmul.f32 %v669, %v39
    %v671 = vmul.f32 %v668, %v40
    %v672 = vmul.f32 %v667, %v41
    %v673 = vmul.f32 %v666, %v42
    %674 = vst [vmem:[#allocation3 + $0x20] sm:$0xff] %v670
    %675 = vst [vmem:[#allocation3 + $0x28] sm:$0xff] %v671
    %676 = vst [vmem:[#allocation3 + $0x30] sm:$0xff] %v672
    %677 = vst [vmem:[#allocation3 + $0x38] sm:$0xff] %v673
    %678 = vrot.lane.b32.xlu0 %v634, 15
    %v679 = vpop.permute.xlu0 %678
    %680 = vrot.lane.b32.xlu0 %v635, 15
    %v681 = vpop.permute.xlu0 %680
    %682 = vrot.lane.b32.xlu0 %v636, 15
    %v683 = vpop.permute.xlu0 %682
    %684 = vrot.lane.b32.xlu0 %v637, 15
    %v685 = vpop.permute.xlu0 %684
    %v686 = vsel %vm158, %v683, %v685
    %v687 = vsel %vm158, %v681, %v683
    %v688 = vsel %vm158, %v679, %v681
    %v689 = vsel %vm158, %v685, %v679
    %v690 = vmul.f32 %v689, %v83
    %v691 = vmul.f32 %v688, %v84
    %v692 = vmul.f32 %v687, %v85
    %v693 = vmul.f32 %v686, %v86
    %694 = vst [vmem:[#allocation3 + $0x40] sm:$0xff] %v690
    %695 = vst [vmem:[#allocation3 + $0x48] sm:$0xff] %v691
    %696 = vst [vmem:[#allocation3 + $0x50] sm:$0xff] %v692
    %697 = vst [vmem:[#allocation3 + $0x58] sm:$0xff] %v693
    %698 = vrot.lane.b32.xlu0 %v634, 1
    %v699 = vpop.permute.xlu0 %698
    %700 = vrot.lane.b32.xlu0 %v635, 1
    %v701 = vpop.permute.xlu0 %700
    %702 = vrot.lane.b32.xlu0 %v636, 1
    %v703 = vpop.permute.xlu0 %702
    %704 = vrot.lane.b32.xlu0 %v637, 1
    %v705 = vpop.permute.xlu0 %704
    %v706 = vsel %vm179, %v703, %v705
    %v707 = vsel %vm179, %v701, %v703
    %v708 = vsel %vm179, %v699, %v701
    %v709 = vsel %vm179, %v705, %v699
    %v710 = vmul.f32 %v709, %v63
    %v711 = vmul.f32 %v708, %v64
    %v712 = vmul.f32 %v707, %v65
    %v713 = vmul.f32 %v706, %v66
    %714 = vst [vmem:[#allocation3 + $0x60] sm:$0xff] %v710
    %715 = vst [vmem:[#allocation3 + $0x68] sm:$0xff] %v711
    %716 = vst [vmem:[#allocation3 + $0x70] sm:$0xff] %v712
    %717 = vst [vmem:[#allocation3 + $0x78] sm:$0xff] %v713
    %718 = vst [vmem:[#allocation3 + $0x80] sm:$0xff] %v634
    %719 = vst [vmem:[#allocation3 + $0x88] sm:$0xff] %v635
    %720 = vst [vmem:[#allocation3 + $0x90] sm:$0xff] %v636
    %721 = vst [vmem:[#allocation3 + $0x98] sm:$0xff] %v637
    %722 = vrot.lane.b32.xlu0 %v634, 127
    %v723 = vpop.permute.xlu0 %722
    %724 = vrot.lane.b32.xlu0 %v635, 127
    %v725 = vpop.permute.xlu0 %724
    %726 = vrot.lane.b32.xlu0 %v636, 127
    %v727 = vpop.permute.xlu0 %726
    %728 = vrot.lane.b32.xlu0 %v637, 127
    %v729 = vpop.permute.xlu0 %728
    %v730 = vsel %vm204, %v727, %v729
    %v731 = vsel %vm204, %v725, %v727
    %v732 = vsel %vm204, %v723, %v725
    %v733 = vsel %vm204, %v729, %v723
    %v734 = vmul.f32 %v732, %v75
    %v735 = vmul.f32 %v731, %v76
    %v736 = vmul.f32 %v730, %v77
    %v737 = vmul.f32 %v733, %v78
    %738 = vst [vmem:[#allocation3 + $0xa0] sm:$0xff] %v734
    %739 = vst [vmem:[#allocation3 + $0xa8] sm:$0xff] %v735
    %740 = vst [vmem:[#allocation3 + $0xb0] sm:$0xff] %v736
    %741 = vst [vmem:[#allocation3 + $0xb8] sm:$0xff] %v737
    %742 = vrot.lane.b32.xlu0 %v634, 113
    %v743 = vpop.permute.xlu0 %742
    %744 = vrot.lane.b32.xlu0 %v635, 113
    %v745 = vpop.permute.xlu0 %744
    %746 = vrot.lane.b32.xlu0 %v636, 113
    %v747 = vpop.permute.xlu0 %746
    %748 = vrot.lane.b32.xlu0 %v637, 113
    %v749 = vpop.permute.xlu0 %748
    %v750 = vsel %vm225, %v747, %v749
    %v751 = vsel %vm225, %v745, %v747
    %v752 = vsel %vm225, %v743, %v745
    %v753 = vsel %vm225, %v749, %v743
    %v754 = vmul.f32 %v752, %v87
    %v755 = vmul.f32 %v751, %v88
    %v756 = vmul.f32 %v750, %v89
    %v757 = vmul.f32 %v753, %v90
    %758 = vst [vmem:[#allocation3 + $0xc0] sm:$0xff] %v754
    %759 = vst [vmem:[#allocation3 + $0xc8] sm:$0xff] %v755
    %760 = vst [vmem:[#allocation3 + $0xd0] sm:$0xff] %v756
    %761 = vst [vmem:[#allocation3 + $0xd8] sm:$0xff] %v757
    %762 = vrot.lane.b32.xlu0 %v634, 112
    %v763 = vpop.permute.xlu0 %762
    %764 = vrot.lane.b32.xlu0 %v635, 112
    %v765 = vpop.permute.xlu0 %764
    %766 = vrot.lane.b32.xlu0 %v636, 112
    %v767 = vpop.permute.xlu0 %766
    %768 = vrot.lane.b32.xlu0 %v637, 112
    %v769 = vpop.permute.xlu0 %768
    %v770 = vsel %vm246, %v767, %v769
    %v771 = vsel %vm246, %v765, %v767
    %v772 = vsel %vm246, %v763, %v765
    %v773 = vsel %vm246, %v769, %v763
    %v774 = vmul.f32 %v772, %v51
    %v775 = vmul.f32 %v771, %v52
    %v776 = vmul.f32 %v770, %v53
    %v777 = vmul.f32 %v773, %v54
    %778 = vst [vmem:[#allocation3 + $0xe0] sm:$0xff] %v774
    %779 = vst [vmem:[#allocation3 + $0xe8] sm:$0xff] %v775
    %780 = vst [vmem:[#allocation3 + $0xf0] sm:$0xff] %v776
    %781 = vst [vmem:[#allocation3 + $0xf8] sm:$0xff] %v777
    %782 = vrot.lane.b32.xlu0 %v634, 111
    %v783 = vpop.permute.xlu0 %782
    %784 = vrot.lane.b32.xlu0 %v635, 111
    %v785 = vpop.permute.xlu0 %784
    %786 = vrot.lane.b32.xlu0 %v636, 111
    %v787 = vpop.permute.xlu0 %786
    %788 = vrot.lane.b32.xlu0 %v637, 111
    %v789 = vpop.permute.xlu0 %788
    %v790 = vsel %vm267, %v787, %v789
    %v791 = vsel %vm267, %v785, %v787
    %v792 = vsel %vm267, %v783, %v785
    %v793 = vsel %vm267, %v789, %v783
    %v794 = vmul.f32 %v792, %v91
    %v795 = vmul.f32 %v791, %v92
    %v796 = vmul.f32 %v790, %v93
    %v797 = vmul.f32 %v793, %v94
    %798 = vst [vmem:[#allocation3 + $0x100] sm:$0xff] %v794
    %799 = vst [vmem:[#allocation3 + $0x108] sm:$0xff] %v795
    %800 = vst [vmem:[#allocation3 + $0x110] sm:$0xff] %v796
    %801 = vst [vmem:[#allocation3 + $0x118] sm:$0xff] %v797
    %s802 = scalar_lea.vmem %s1, 16
    %v803 = vld [vmem:[%s802] sm:$0xff]
    %v804 = vld [vmem:[%s802 + $0x8] sm:$0xff]
    %v805 = vld [vmem:[#allocation3] sm:$0xff]
    %v806 = vld [vmem:[#allocation3 + $0x8] sm:$0xff]
    %v807 = vld [vmem:[#allocation3 + $0x10] sm:$0xff]
    %v808 = vld [vmem:[#allocation3 + $0x18] sm:$0xff]
    %v809 = vld [vmem:[#allocation3 + $0x20] sm:$0xff]
    %v810 = vld [vmem:[#allocation3 + $0x28] sm:$0xff]
    %v811 = vld [vmem:[#allocation3 + $0x30] sm:$0xff]
    %v812 = vld [vmem:[#allocation3 + $0x38] sm:$0xff]
    %v813 = vld [vmem:[#allocation3 + $0x40] sm:$0xff]
    %v814 = vld [vmem:[#allocation3 + $0x48] sm:$0xff]
    %v815 = vld [vmem:[#allocation3 + $0x50] sm:$0xff]
    %v816 = vld [vmem:[#allocation3 + $0x58] sm:$0xff]
    %v817 = vld [vmem:[#allocation3 + $0x60] sm:$0xff]
    %v818 = vld [vmem:[#allocation3 + $0x68] sm:$0xff]
    %v819 = vld [vmem:[#allocation3 + $0x70] sm:$0xff]
    %v820 = vld [vmem:[#allocation3 + $0x78] sm:$0xff]
    %v821 = vld [vmem:[#allocation3 + $0x80] sm:$0xff]
    %v822 = vld [vmem:[#allocation3 + $0x88] sm:$0xff]
    %v823 = vld [vmem:[#allocation3 + $0x90] sm:$0xff]
    %v824 = vld [vmem:[#allocation3 + $0x98] sm:$0xff]
    %v825 = vld [vmem:[#allocation3 + $0xa0] sm:$0xff]
    %v826 = vld [vmem:[#allocation3 + $0xa8] sm:$0xff]
    %v827 = vld [vmem:[#allocation3 + $0xb0] sm:$0xff]
    %v828 = vld [vmem:[#allocation3 + $0xb8] sm:$0xff]
    %v829 = vld [vmem:[#allocation3 + $0xc0] sm:$0xff]
    %v830 = vld [vmem:[#allocation3 + $0xc8] sm:$0xff]
    %v831 = vld [vmem:[#allocation3 + $0xd0] sm:$0xff]
    %v832 = vld [vmem:[#allocation3 + $0xd8] sm:$0xff]
    %v833 = vld [vmem:[#allocation3 + $0xe0] sm:$0xff]
    %v834 = vld [vmem:[#allocation3 + $0xe8] sm:$0xff]
    %v835 = vld [vmem:[#allocation3 + $0xf0] sm:$0xff]
    %v836 = vld [vmem:[#allocation3 + $0xf8] sm:$0xff]
    %v837 = vld [vmem:[#allocation3 + $0x100] sm:$0xff]
    %v838 = vld [vmem:[#allocation3 + $0x108] sm:$0xff]
    %v839 = vld [vmem:[#allocation3 + $0x110] sm:$0xff]
    %v840 = vld [vmem:[#allocation3 + $0x118] sm:$0xff]
    %v842 = vsel %vm318, %v803, 0
    %v845 = vsel %vm318, %v804, 0
    %847 = vmatprep.subr.mxu0 %v806
    %848 = vmatpush1.msra.mxu0 %v805
    %849 = vmatprep.subr.mxu0 %v810
    %850 = vmatpush1.msra.mxu0 %v809
    %851 = vmatprep.subr.mxu0 %v814
    %852 = vmatpush1.msra.mxu0 %v813
    %853 = vmatprep.subr.mxu0 %v818
    %854 = vmatpush1.msra.mxu0 %v817
    %855 = vmatprep.subr.mxu0 %v822
    %856 = vmatpush1.msra.mxu0 %v821
    %857 = vmatprep.subr.mxu0 %v826
    %858 = vmatpush1.msra.mxu0 %v825
    %859 = vmatprep.subr.mxu0 %v830
    %860 = vmatpush1.msra.mxu0 %v829
    %861 = vmatprep.subr.mxu0 %v834
    %862 = vmatpush1.msra.mxu0 %v833
    %863 = vmatprep.subr.mxu0 %v838
    %864 = vmatpush1.msra.mxu0 %v837
    %865 = vmatprep.subr.mxu0 0.0
    %866 = vmatpush1.msra.mxu0 0.0
    %867 = vmatprep.subr.mxu0 0.0
    %868 = vmatpush1.msra.mxu0 0.0
    %869 = vmatprep.subr.mxu0 0.0
    %870 = vmatpush1.msra.mxu0 0.0
    %871 = vmatprep.subr.mxu0 0.0
    %872 = vmatpush1.msra.mxu0 0.0
    %873 = vmatprep.subr.mxu0 0.0
    %874 = vmatpush1.msra.mxu0 0.0
    %875 = vmatprep.subr.mxu0 0.0
    %876 = vmatpush1.msra.mxu0 0.0
    %877 = vmatprep.subr.mxu0 0.0
    %878 = vmatpush1.msra.mxu0 0.0
    %879 = vmatprep.subr.mxu0 0.0
    %880 = vmatpush1.msra.mxu0 0.0
    %881 = vmatprep.subr.mxu0 0.0
    %882 = vmatpush1.msra.mxu0 0.0
    %883 = vmatprep.subr.mxu0 0.0
    %884 = vmatpush1.msra.mxu0 0.0
    %885 = vmatprep.subr.mxu0 0.0
    %886 = vmatpush1.msra.mxu0 0.0
    %887 = vmatprep.subr.mxu0 0.0
    %888 = vmatpush1.msra.mxu0 0.0
    %889 = vmatprep.subr.mxu0 0.0
    %890 = vmatpush1.msra.mxu0 0.0
    %891 = vmatprep.subr.mxu0 0.0
    %892 = vmatpush1.msra.mxu0 0.0
    %893 = vmatprep.subr.mxu0 0.0
    %894 = vmatpush1.msra.mxu0 0.0
    %895 = vmatprep.subr.mxu0 0.0
    %896 = vmatpush1.msra.mxu0 0.0
    %897 = vmatprep.subr.mxu0 0.0
    %898 = vmatpush1.msra.mxu0 0.0
    %899 = vmatprep.subr.mxu0 0.0
    %900 = vmatpush1.msra.mxu0 0.0
    %901 = vmatprep.subr.mxu0 0.0
    %902 = vmatpush1.msra.mxu0 0.0
    %903 = vmatprep.subr.mxu0 0.0
    %904 = vmatpush1.msra.mxu0 0.0
    %905 = vmatprep.subr.mxu0 0.0
    %906 = vmatpush1.msra.mxu0 0.0
    %907 = vmatprep.subr.mxu0 0.0
    %908 = vmatpush1.msra.mxu0 0.0
    %909 = vmatprep.subr.mxu0 0.0
    %910 = vmatpush1.msra.mxu0 0.0
    %911 = vmatprep.mubr.f32.mxu0 0.0
    %912 = vmatmul.mubr.f32.gmra.mrb[0].mxu0 %v842
    %v913 = vpop.f32.mrb[0].mxu0
    %v914 = vadd.f32 0.0, %v913
    %v915 = vpop.f32.mrb[0].mxu0
    %v916 = vadd.f32 0.0, %v915
    %917 = vmatprep.mubr.f32.mxu0 0.0
    %918 = vmatmul.mubr.f32.gmra.mrb[0].mxu0 %v845
    %v919 = vpop.f32.mrb[0].mxu0
    %v920 = vadd.f32 0.0, %v919
    %v921 = vpop.f32.mrb[0].mxu0
    %v922 = vadd.f32 0.0, %v921
    %923 = vdwg.mxu0
    %924 = vmatprep.subr.mxu0 %v808
    %925 = vmatpush1.msra.mxu0 %v807
    %926 = vmatprep.subr.mxu0 %v812
    %927 = vmatpush1.msra.mxu0 %v811
    %928 = vmatprep.subr.mxu0 %v816
    %929 = vmatpush1.msra.mxu0 %v815
    %930 = vmatprep.subr.mxu0 %v820
    %931 = vmatpush1.msra.mxu0 %v819
    %932 = vmatprep.subr.mxu0 %v824
    %933 = vmatpush1.msra.mxu0 %v823
    %934 = vmatprep.subr.mxu0 %v828
    %935 = vmatpush1.msra.mxu0 %v827
    %936 = vmatprep.subr.mxu0 %v832
    %937 = vmatpush1.msra.mxu0 %v831
    %938 = vmatprep.subr.mxu0 %v836
    %939 = vmatpush1.msra.mxu0 %v835
    %940 = vmatprep.subr.mxu0 %v840
    %941 = vmatpush1.msra.mxu0 %v839
    %942 = vmatprep.subr.mxu0 0.0
    %943 = vmatpush1.msra.mxu0 0.0
    %944 = vmatprep.subr.mxu0 0.0
    %945 = vmatpush1.msra.mxu0 0.0
    %946 = vmatprep.subr.mxu0 0.0
    %947 = vmatpush1.msra.mxu0 0.0
    %948 = vmatprep.subr.mxu0 0.0
    %949 = vmatpush1.msra.mxu0 0.0
    %950 = vmatprep.subr.mxu0 0.0
    %951 = vmatpush1.msra.mxu0 0.0
    %952 = vmatprep.subr.mxu0 0.0
    %953 = vmatpush1.msra.mxu0 0.0
    %954 = vmatprep.subr.mxu0 0.0
    %955 = vmatpush1.msra.mxu0 0.0
    %956 = vmatprep.subr.mxu0 0.0
    %957 = vmatpush1.msra.mxu0 0.0
    %958 = vmatprep.subr.mxu0 0.0
    %959 = vmatpush1.msra.mxu0 0.0
    %960 = vmatprep.subr.mxu0 0.0
    %961 = vmatpush1.msra.mxu0 0.0
    %962 = vmatprep.subr.mxu0 0.0
    %963 = vmatpush1.msra.mxu0 0.0
    %964 = vmatprep.subr.mxu0 0.0
    %965 = vmatpush1.msra.mxu0 0.0
    %966 = vmatprep.subr.mxu0 0.0
    %967 = vmatpush1.msra.mxu0 0.0
    %968 = vmatprep.subr.mxu0 0.0
    %969 = vmatpush1.msra.mxu0 0.0
    %970 = vmatprep.subr.mxu0 0.0
    %971 = vmatpush1.msra.mxu0 0.0
    %972 = vmatprep.subr.mxu0 0.0
    %973 = vmatpush1.msra.mxu0 0.0
    %974 = vmatprep.subr.mxu0 0.0
    %975 = vmatpush1.msra.mxu0 0.0
    %976 = vmatprep.subr.mxu0 0.0
    %977 = vmatpush1.msra.mxu0 0.0
    %978 = vmatprep.subr.mxu0 0.0
    %979 = vmatpush1.msra.mxu0 0.0
    %980 = vmatprep.subr.mxu0 0.0
    %981 = vmatpush1.msra.mxu0 0.0
    %982 = vmatprep.subr.mxu0 0.0
    %983 = vmatpush1.msra.mxu0 0.0
    %984 = vmatprep.subr.mxu0 0.0
    %985 = vmatpush1.msra.mxu0 0.0
    %986 = vmatprep.subr.mxu0 0.0
    %987 = vmatpush1.msra.mxu0 0.0
    %988 = vmatprep.mubr.f32.mxu0 0.0
    %989 = vmatmul.mubr.f32.gmra.mrb[0].mxu0 %v842
    %v990 = vpop.f32.mrb[0].mxu0
    %v991 = vadd.f32 0.0, %v990
    %v992 = vpop.f32.mrb[0].mxu0
    %v993 = vadd.f32 0.0, %v992
    %994 = vmatprep.mubr.f32.mxu0 0.0
    %995 = vmatmul.mubr.f32.gmra.mrb[0].mxu0 %v845
    %v996 = vpop.f32.mrb[0].mxu0
    %v997 = vadd.f32 0.0, %v996
    %v998 = vpop.f32.mrb[0].mxu0
    %v999 = vadd.f32 0.0, %v998
    %1000 = vdwg.mxu0
    %v1001 = vadd.f32 %v914, %v916
    %v1002 = vadd.f32 %v1001, %v991
    %v1003 = vadd.f32 %v1002, %v993
    %1004 = vadd.xlane.f32.xlu0 %v1003
    %v1005 = vpop.xlane.xlu0 %1004
    %v1006 = vadd.f32 %v920, %v922
    %v1007 = vadd.f32 %v1006, %v997
    %v1008 = vadd.f32 %v1007, %v999
    %1009 = vadd.xlane.f32.xlu0 %v1008
    %v1010 = vpop.xlane.xlu0 %1009
    %v1011 = vmul.f32 %v1005, %v489
    %v1012 = vmul.f32 %v1010, %v489
    %v1013 = vmul.f32 %v914, %v914
    %v1014 = vmul.f32 %v916, %v916
    %v1015 = vmul.f32 %v991, %v991
    %v1016 = vmul.f32 %v993, %v993
    %v1017 = vmul.f32 %v920, %v920
    %v1018 = vmul.f32 %v922, %v922
    %v1019 = vmul.f32 %v997, %v997
    %v1020 = vmul.f32 %v999, %v999
    %v1021 = vadd.f32 %v1013, %v1014
    %v1022 = vadd.f32 %v1021, %v1015
    %v1023 = vadd.f32 %v1022, %v1016
    %1024 = vadd.xlane.f32.xlu0 %v1023
    %v1025 = vpop.xlane.xlu0 %1024
    %v1026 = vadd.f32 %v1017, %v1018
    %v1027 = vadd.f32 %v1026, %v1019
    %v1028 = vadd.f32 %v1027, %v1020
    %1029 = vadd.xlane.f32.xlu0 %v1028
    %v1030 = vpop.xlane.xlu0 %1029
    %v1031 = vmul.f32 %v1025, %v489
    %v1032 = vmul.f32 %v1030, %v489
    %v1033 = vmul.f32 %v1011, %v1011
    %v1034 = vmul.f32 %v1012, %v1012
    %v1035 = vsub.f32 %v1031, %v1033
    %v1036 = vsub.f32 %v1032, %v1034
    %s1037 = scalar_lea.vmem %s2, 16
    %v1038 = vld [vmem:[%s1037] sm:$0xff]
    %v1039 = vld [vmem:[%s1037 + $0x8] sm:$0xff]
    %v1040 = vadd.f32 %v1035, 1e-05
    %v1041 = vadd.f32 %v1036, 1e-05
    %v1042 = vrsqrt.pop %v1040
    %v1043 = vrsqrt.pop %v1041
    %v1044 = vmul.f32 %v1042, %v1038
    %v1045 = vmul.f32 %v1043, %v1039
    %v1046 = vmul.f32 %v1011, %v1044
    %v1047 = vmul.f32 %v1012, %v1045
    %1050 = vrot.lane.b32.xlu0 %v1046, 1
    %v1051 = vpop.permute.xlu0 %1050
    %1052 = vrot.lane.b32.xlu0 %v1047, 1
    %v1053 = vpop.permute.xlu0 %1052
    %v1056 = vsub.f32 %v1038, %v1051
    %v1057 = vsub.f32 %v1039, %v1053
    %1059 = vset.pattern.permute.xlu0 0
    %1060 = vperm.xlu0 %1059, %v1044
    %v1061 = vpop.permute.xlu0 %1060
    %1064 = vset.pattern.permute.xlu0 0
    %1065 = vperm.xlu0 %1064, %v1045
    %v1066 = vpop.permute.xlu0 %1065
    %v1068 = vmul.f32 %v914, %v1061
    %v1069 = vmul.f32 %v916, %v1061
    %v1070 = vmul.f32 %v991, %v1061
    %v1071 = vmul.f32 %v993, %v1061
    %v1072 = vmul.f32 %v920, %v1066
    %v1073 = vmul.f32 %v922, %v1066
    %v1074 = vmul.f32 %v997, %v1066
    %v1075 = vmul.f32 %v999, %v1066
    %1077 = vset.pattern.permute.xlu0 1
    %1078 = vperm.xlu0 %1077, %v1056
    %v1079 = vpop.permute.xlu0 %1078
    %1082 = vset.pattern.permute.xlu0 1
    %1083 = vperm.xlu0 %1082, %v1057
    %v1084 = vpop.permute.xlu0 %1083
    %v1086 = vadd.f32 %v1068, %v1079
    %v1087 = vadd.f32 %v1069, %v1079
    %v1088 = vadd.f32 %v1070, %v1079
    %v1089 = vadd.f32 %v1071, %v1079
    %v1090 = vadd.f32 %v1072, %v1084
    %v1091 = vadd.f32 %v1073, %v1084
    %v1092 = vadd.f32 %v1074, %v1084
    %v1093 = vadd.f32 %v1075, %v1084
    %v1094 = vmax.f32 %v1086, 0.0
    %v1095 = vmax.f32 %v1087, 0.0
    %v1096 = vmax.f32 %v1088, 0.0
    %v1097 = vmax.f32 %v1089, 0.0
    %v1098 = vadd.f32 %v1094, %v1090
    %v1099 = vadd.f32 %v1095, %v1091
    %v1100 = vadd.f32 %v1096, %v1092
    %v1101 = vadd.f32 %v1097, %v1093
    %v1102 = vmax.f32 %v1098, 0.0
    %v1103 = vmax.f32 %v1099, 0.0
    %v1104 = vmax.f32 %v1100, 0.0
    %v1105 = vmax.f32 %v1101, 0.0
    %v1106 = vadd.f32 %v1102, %v1103
    %v1107 = vadd.f32 %v1106, %v1104
    %v1108 = vadd.f32 %v1107, %v1105
    %1109 = vadd.xlane.f32.xlu0 %v1108
    %v1110 = vpop.xlane.xlu0 %1109
    %v1111 = vmul.f32 %v1110, %v489
    %v1112 = vmul.f32 %v1102, %v1102
    %v1113 = vmul.f32 %v1103, %v1103
    %v1114 = vmul.f32 %v1104, %v1104
    %v1115 = vmul.f32 %v1105, %v1105
    %v1116 = vadd.f32 %v1112, %v1113
    %v1117 = vadd.f32 %v1116, %v1114
    %v1118 = vadd.f32 %v1117, %v1115
    %1119 = vadd.xlane.f32.xlu0 %v1118
    %v1120 = vpop.xlane.xlu0 %1119
    %v1121 = vmul.f32 %v1120, %v489
    %v1122 = vmul.f32 %v1111, %v1111
    %v1123 = vsub.f32 %v1121, %v1122
    %s1124 = scalar_lea.vmem %s3, 8
    %v1125 = vld [vmem:[%s1124] sm:$0xff]
    %v1126 = vadd.f32 %v1123, 1e-05
    %v1127 = vrsqrt.pop %v1126
    %v1128 = vmul.f32 %v1127, %v1125
    %v1129 = vmul.f32 %v1111, %v1128
    %1131 = vrot.lane.b32.xlu0 %v1129, 1
    %v1132 = vpop.permute.xlu0 %1131
    %v1134 = vsub.f32 %v1125, %v1132
    %1136 = vset.pattern.permute.xlu0 0
    %1137 = vperm.xlu0 %1136, %v1128
    %v1138 = vpop.permute.xlu0 %1137
    %v1140 = vmul.f32 %v1102, %v1138
    %v1141 = vmul.f32 %v1103, %v1138
    %v1142 = vmul.f32 %v1104, %v1138
    %v1143 = vmul.f32 %v1105, %v1138
    %1145 = vset.pattern.permute.xlu0 1
    %1146 = vperm.xlu0 %1145, %v1134
    %v1147 = vpop.permute.xlu0 %1146
    %v1149 = vadd.f32 %v1140, %v1147
    %v1150 = vadd.f32 %v1141, %v1147
    %v1151 = vadd.f32 %v1142, %v1147
    %v1152 = vadd.f32 %v1143, %v1147
    %1153 = vst [vmem:[#allocation2] sm:$0xff] %v1149
    %1154 = vst [vmem:[#allocation2 + $0x8] sm:$0xff] %v1150
    %1155 = vst [vmem:[#allocation2 + $0x10] sm:$0xff] %v1151
    %1156 = vst [vmem:[#allocation2 + $0x18] sm:$0xff] %v1152
    %v1157 = vld [vmem:[#allocation2] sm:$0xff]
    %v1158 = vld [vmem:[#allocation2 + $0x8] sm:$0xff]
    %v1159 = vld [vmem:[#allocation2 + $0x10] sm:$0xff]
    %v1160 = vld [vmem:[#allocation2 + $0x18] sm:$0xff]
    %1161 = vrot.lane.b32.xlu0 %v1157, 17
    %v1162 = vpop.permute.xlu0 %1161
    %1163 = vrot.lane.b32.xlu0 %v1158, 17
    %v1164 = vpop.permute.xlu0 %1163
    %1165 = vrot.lane.b32.xlu0 %v1159, 17
    %v1166 = vpop.permute.xlu0 %1165
    %1167 = vrot.lane.b32.xlu0 %v1160, 17
    %v1168 = vpop.permute.xlu0 %1167
    %v1169 = vsel %vm116, %v1166, %v1168
    %v1170 = vsel %vm116, %v1164, %v1166
    %v1171 = vsel %vm116, %v1162, %v1164
    %v1172 = vsel %vm116, %v1168, %v1162
    %v1173 = vmul.f32 %v1172, %v79
    %v1174 = vmul.f32 %v1171, %v80
    %v1175 = vmul.f32 %v1170, %v81
    %v1176 = vmul.f32 %v1169, %v82
    %1177 = vst [vmem:[#allocation3] sm:$0xff] %v1173
    %1178 = vst [vmem:[#allocation3 + $0x8] sm:$0xff] %v1174
    %1179 = vst [vmem:[#allocation3 + $0x10] sm:$0xff] %v1175
    %1180 = vst [vmem:[#allocation3 + $0x18] sm:$0xff] %v1176
    %1181 = vrot.lane.b32.xlu0 %v1157, 16
    %v1182 = vpop.permute.xlu0 %1181
    %1183 = vrot.lane.b32.xlu0 %v1158, 16
    %v1184 = vpop.permute.xlu0 %1183
    %1185 = vrot.lane.b32.xlu0 %v1159, 16
    %v1186 = vpop.permute.xlu0 %1185
    %1187 = vrot.lane.b32.xlu0 %v1160, 16
    %v1188 = vpop.permute.xlu0 %1187
    %v1189 = vsel %vm137, %v1186, %v1188
    %v1190 = vsel %vm137, %v1184, %v1186
    %v1191 = vsel %vm137, %v1182, %v1184
    %v1192 = vsel %vm137, %v1188, %v1182
    %v1193 = vmul.f32 %v1192, %v39
    %v1194 = vmul.f32 %v1191, %v40
    %v1195 = vmul.f32 %v1190, %v41
    %v1196 = vmul.f32 %v1189, %v42
    %1197 = vst [vmem:[#allocation3 + $0x20] sm:$0xff] %v1193
    %1198 = vst [vmem:[#allocation3 + $0x28] sm:$0xff] %v1194
    %1199 = vst [vmem:[#allocation3 + $0x30] sm:$0xff] %v1195
    %1200 = vst [vmem:[#allocation3 + $0x38] sm:$0xff] %v1196
    %1201 = vrot.lane.b32.xlu0 %v1157, 15
    %v1202 = vpop.permute.xlu0 %1201
    %1203 = vrot.lane.b32.xlu0 %v1158, 15
    %v1204 = vpop.permute.xlu0 %1203
    %1205 = vrot.lane.b32.xlu0 %v1159, 15
    %v1206 = vpop.permute.xlu0 %1205
    %1207 = vrot.lane.b32.xlu0 %v1160, 15
    %v1208 = vpop.permute.xlu0 %1207
    %v1209 = vsel %vm158, %v1206, %v1208
    %v1210 = vsel %vm158, %v1204, %v1206
    %v1211 = vsel %vm158, %v1202, %v1204
    %v1212 = vsel %vm158, %v1208, %v1202
    %v1213 = vmul.f32 %v1212, %v83
    %v1214 = vmul.f32 %v1211, %v84
    %v1215 = vmul.f32 %v1210, %v85
    %v1216 = vmul.f32 %v1209, %v86
    %1217 = vst [vmem:[#allocation3 + $0x40] sm:$0xff] %v1213
    %1218 = vst [vmem:[#allocation3 + $0x48] sm:$0xff] %v1214
    %1219 = vst [vmem:[#allocation3 + $0x50] sm:$0xff] %v1215
    %1220 = vst [vmem:[#allocation3 + $0x58] sm:$0xff] %v1216
    %1221 = vrot.lane.b32.xlu0 %v1157, 1
    %v1222 = vpop.permute.xlu0 %1221
    %1223 = vrot.lane.b32.xlu0 %v1158, 1
    %v1224 = vpop.permute.xlu0 %1223
    %1225 = vrot.lane.b32.xlu0 %v1159, 1
    %v1226 = vpop.permute.xlu0 %1225
    %1227 = vrot.lane.b32.xlu0 %v1160, 1
    %v1228 = vpop.permute.xlu0 %1227
    %v1229 = vsel %vm179, %v1226, %v1228
    %v1230 = vsel %vm179, %v1224, %v1226
    %v1231 = vsel %vm179, %v1222, %v1224
    %v1232 = vsel %vm179, %v1228, %v1222
    %v1233 = vmul.f32 %v1232, %v63
    %v1234 = vmul.f32 %v1231, %v64
    %v1235 = vmul.f32 %v1230, %v65
    %v1236 = vmul.f32 %v1229, %v66
    %1237 = vst [vmem:[#allocation3 + $0x60] sm:$0xff] %v1233
    %1238 = vst [vmem:[#allocation3 + $0x68] sm:$0xff] %v1234
    %1239 = vst [vmem:[#allocation3 + $0x70] sm:$0xff] %v1235
    %1240 = vst [vmem:[#allocation3 + $0x78] sm:$0xff] %v1236
    %1241 = vst [vmem:[#allocation3 + $0x80] sm:$0xff] %v1157
    %1242 = vst [vmem:[#allocation3 + $0x88] sm:$0xff] %v1158
    %1243 = vst [vmem:[#allocation3 + $0x90] sm:$0xff] %v1159
    %1244 = vst [vmem:[#allocation3 + $0x98] sm:$0xff] %v1160
    %1245 = vrot.lane.b32.xlu0 %v1157, 127
    %v1246 = vpop.permute.xlu0 %1245
    %1247 = vrot.lane.b32.xlu0 %v1158, 127
    %v1248 = vpop.permute.xlu0 %1247
    %1249 = vrot.lane.b32.xlu0 %v1159, 127
    %v1250 = vpop.permute.xlu0 %1249
    %1251 = vrot.lane.b32.xlu0 %v1160, 127
    %v1252 = vpop.permute.xlu0 %1251
    %v1253 = vsel %vm204, %v1250, %v1252
    %v1254 = vsel %vm204, %v1248, %v1250
    %v1255 = vsel %vm204, %v1246, %v1248
    %v1256 = vsel %vm204, %v1252, %v1246
    %v1257 = vmul.f32 %v1255, %v75
    %v1258 = vmul.f32 %v1254, %v76
    %v1259 = vmul.f32 %v1253, %v77
    %v1260 = vmul.f32 %v1256, %v78
    %1261 = vst [vmem:[#allocation3 + $0xa0] sm:$0xff] %v1257
    %1262 = vst [vmem:[#allocation3 + $0xa8] sm:$0xff] %v1258
    %1263 = vst [vmem:[#allocation3 + $0xb0] sm:$0xff] %v1259
    %1264 = vst [vmem:[#allocation3 + $0xb8] sm:$0xff] %v1260
    %1265 = vrot.lane.b32.xlu0 %v1157, 113
    %v1266 = vpop.permute.xlu0 %1265
    %1267 = vrot.lane.b32.xlu0 %v1158, 113
    %v1268 = vpop.permute.xlu0 %1267
    %1269 = vrot.lane.b32.xlu0 %v1159, 113
    %v1270 = vpop.permute.xlu0 %1269
    %1271 = vrot.lane.b32.xlu0 %v1160, 113
    %v1272 = vpop.permute.xlu0 %1271
    %v1273 = vsel %vm225, %v1270, %v1272
    %v1274 = vsel %vm225, %v1268, %v1270
    %v1275 = vsel %vm225, %v1266, %v1268
    %v1276 = vsel %vm225, %v1272, %v1266
    %v1277 = vmul.f32 %v1275, %v87
    %v1278 = vmul.f32 %v1274, %v88
    %v1279 = vmul.f32 %v1273, %v89
    %v1280 = vmul.f32 %v1276, %v90
    %1281 = vst [vmem:[#allocation3 + $0xc0] sm:$0xff] %v1277
    %1282 = vst [vmem:[#allocation3 + $0xc8] sm:$0xff] %v1278
    %1283 = vst [vmem:[#allocation3 + $0xd0] sm:$0xff] %v1279
    %1284 = vst [vmem:[#allocation3 + $0xd8] sm:$0xff] %v1280
    %1285 = vrot.lane.b32.xlu0 %v1157, 112
    %v1286 = vpop.permute.xlu0 %1285
    %1287 = vrot.lane.b32.xlu0 %v1158, 112
    %v1288 = vpop.permute.xlu0 %1287
    %1289 = vrot.lane.b32.xlu0 %v1159, 112
    %v1290 = vpop.permute.xlu0 %1289
    %1291 = vrot.lane.b32.xlu0 %v1160, 112
    %v1292 = vpop.permute.xlu0 %1291
    %v1293 = vsel %vm246, %v1290, %v1292
    %v1294 = vsel %vm246, %v1288, %v1290
    %v1295 = vsel %vm246, %v1286, %v1288
    %v1296 = vsel %vm246, %v1292, %v1286
    %v1297 = vmul.f32 %v1295, %v51
    %v1298 = vmul.f32 %v1294, %v52
    %v1299 = vmul.f32 %v1293, %v53
    %v1300 = vmul.f32 %v1296, %v54
    %1301 = vst [vmem:[#allocation3 + $0xe0] sm:$0xff] %v1297
    %1302 = vst [vmem:[#allocation3 + $0xe8] sm:$0xff] %v1298
    %1303 = vst [vmem:[#allocation3 + $0xf0] sm:$0xff] %v1299
    %1304 = vst [vmem:[#allocation3 + $0xf8] sm:$0xff] %v1300
    %1305 = vrot.lane.b32.xlu0 %v1157, 111
    %v1306 = vpop.permute.xlu0 %1305
    %1307 = vrot.lane.b32.xlu0 %v1158, 111
    %v1308 = vpop.permute.xlu0 %1307
    %1309 = vrot.lane.b32.xlu0 %v1159, 111
    %v1310 = vpop.permute.xlu0 %1309
    %1311 = vrot.lane.b32.xlu0 %v1160, 111
    %v1312 = vpop.permute.xlu0 %1311
    %v1313 = vsel %vm267, %v1310, %v1312
    %v1314 = vsel %vm267, %v1308, %v1310
    %v1315 = vsel %vm267, %v1306, %v1308
    %v1316 = vsel %vm267, %v1312, %v1306
    %v1317 = vmul.f32 %v1315, %v91
    %v1318 = vmul.f32 %v1314, %v92
    %v1319 = vmul.f32 %v1313, %v93
    %v1320 = vmul.f32 %v1316, %v94
    %1321 = vst [vmem:[#allocation3 + $0x100] sm:$0xff] %v1317
    %1322 = vst [vmem:[#allocation3 + $0x108] sm:$0xff] %v1318
    %1323 = vst [vmem:[#allocation3 + $0x110] sm:$0xff] %v1319
    %1324 = vst [vmem:[#allocation3 + $0x118] sm:$0xff] %v1320
    %s1325 = scalar_lea.vmem %s1, 32
    %v1326 = vld [vmem:[%s1325] sm:$0xff]
    %v1327 = vld [vmem:[%s1325 + $0x8] sm:$0xff]
    %v1328 = vld [vmem:[#allocation3] sm:$0xff]
    %v1329 = vld [vmem:[#allocation3 + $0x8] sm:$0xff]
    %v1330 = vld [vmem:[#allocation3 + $0x10] sm:$0xff]
    %v1331 = vld [vmem:[#allocation3 + $0x18] sm:$0xff]
    %v1332 = vld [vmem:[#allocation3 + $0x20] sm:$0xff]
    %v1333 = vld [vmem:[#allocation3 + $0x28] sm:$0xff]
    %v1334 = vld [vmem:[#allocation3 + $0x30] sm:$0xff]
    %v1335 = vld [vmem:[#allocation3 + $0x38] sm:$0xff]
    %v1336 = vld [vmem:[#allocation3 + $0x40] sm:$0xff]
    %v1337 = vld [vmem:[#allocation3 + $0x48] sm:$0xff]
    %v1338 = vld [vmem:[#allocation3 + $0x50] sm:$0xff]
    %v1339 = vld [vmem:[#allocation3 + $0x58] sm:$0xff]
    %v1340 = vld [vmem:[#allocation3 + $0x60] sm:$0xff]
    %v1341 = vld [vmem:[#allocation3 + $0x68] sm:$0xff]
    %v1342 = vld [vmem:[#allocation3 + $0x70] sm:$0xff]
    %v1343 = vld [vmem:[#allocation3 + $0x78] sm:$0xff]
    %v1344 = vld [vmem:[#allocation3 + $0x80] sm:$0xff]
    %v1345 = vld [vmem:[#allocation3 + $0x88] sm:$0xff]
    %v1346 = vld [vmem:[#allocation3 + $0x90] sm:$0xff]
    %v1347 = vld [vmem:[#allocation3 + $0x98] sm:$0xff]
    %v1348 = vld [vmem:[#allocation3 + $0xa0] sm:$0xff]
    %v1349 = vld [vmem:[#allocation3 + $0xa8] sm:$0xff]
    %v1350 = vld [vmem:[#allocation3 + $0xb0] sm:$0xff]
    %v1351 = vld [vmem:[#allocation3 + $0xb8] sm:$0xff]
    %v1352 = vld [vmem:[#allocation3 + $0xc0] sm:$0xff]
    %v1353 = vld [vmem:[#allocation3 + $0xc8] sm:$0xff]
    %v1354 = vld [vmem:[#allocation3 + $0xd0] sm:$0xff]
    %v1355 = vld [vmem:[#allocation3 + $0xd8] sm:$0xff]
    %v1356 = vld [vmem:[#allocation3 + $0xe0] sm:$0xff]
    %v1357 = vld [vmem:[#allocation3 + $0xe8] sm:$0xff]
    %v1358 = vld [vmem:[#allocation3 + $0xf0] sm:$0xff]
    %v1359 = vld [vmem:[#allocation3 + $0xf8] sm:$0xff]
    %v1360 = vld [vmem:[#allocation3 + $0x100] sm:$0xff]
    %v1361 = vld [vmem:[#allocation3 + $0x108] sm:$0xff]
    %v1362 = vld [vmem:[#allocation3 + $0x110] sm:$0xff]
    %v1363 = vld [vmem:[#allocation3 + $0x118] sm:$0xff]
    %v1365 = vsel %vm318, %v1326, 0
    %v1368 = vsel %vm318, %v1327, 0
    %1370 = vmatprep.subr.mxu0 %v1329
    %1371 = vmatpush1.msra.mxu0 %v1328
    %1372 = vmatprep.subr.mxu0 %v1333
    %1373 = vmatpush1.msra.mxu0 %v1332
    %1374 = vmatprep.subr.mxu0 %v1337
    %1375 = vmatpush1.msra.mxu0 %v1336
    %1376 = vmatprep.subr.mxu0 %v1341
    %1377 = vmatpush1.msra.mxu0 %v1340
    %1378 = vmatprep.subr.mxu0 %v1345
    %1379 = vmatpush1.msra.mxu0 %v1344
    %1380 = vmatprep.subr.mxu0 %v1349
    %1381 = vmatpush1.msra.mxu0 %v1348
    %1382 = vmatprep.subr.mxu0 %v1353
    %1383 = vmatpush1.msra.mxu0 %v1352
    %1384 = vmatprep.subr.mxu0 %v1357
    %1385 = vmatpush1.msra.mxu0 %v1356
    %1386 = vmatprep.subr.mxu0 %v1361
    %1387 = vmatpush1.msra.mxu0 %v1360
    %1388 = vmatprep.subr.mxu0 0.0
    %1389 = vmatpush1.msra.mxu0 0.0
    %1390 = vmatprep.subr.mxu0 0.0
    %1391 = vmatpush1.msra.mxu0 0.0
    %1392 = vmatprep.subr.mxu0 0.0
    %1393 = vmatpush1.msra.mxu0 0.0
    %1394 = vmatprep.subr.mxu0 0.0
    %1395 = vmatpush1.msra.mxu0 0.0
    %1396 = vmatprep.subr.mxu0 0.0
    %1397 = vmatpush1.msra.mxu0 0.0
    %1398 = vmatprep.subr.mxu0 0.0
    %1399 = vmatpush1.msra.mxu0 0.0
    %1400 = vmatprep.subr.mxu0 0.0
    %1401 = vmatpush1.msra.mxu0 0.0
    %1402 = vmatprep.subr.mxu0 0.0
    %1403 = vmatpush1.msra.mxu0 0.0
    %1404 = vmatprep.subr.mxu0 0.0
    %1405 = vmatpush1.msra.mxu0 0.0
    %1406 = vmatprep.subr.mxu0 0.0
    %1407 = vmatpush1.msra.mxu0 0.0
    %1408 = vmatprep.subr.mxu0 0.0
    %1409 = vmatpush1.msra.mxu0 0.0
    %1410 = vmatprep.subr.mxu0 0.0
    %1411 = vmatpush1.msra.mxu0 0.0
    %1412 = vmatprep.subr.mxu0 0.0
    %1413 = vmatpush1.msra.mxu0 0.0
    %1414 = vmatprep.subr.mxu0 0.0
    %1415 = vmatpush1.msra.mxu0 0.0
    %1416 = vmatprep.subr.mxu0 0.0
    %1417 = vmatpush1.msra.mxu0 0.0
    %1418 = vmatprep.subr.mxu0 0.0
    %1419 = vmatpush1.msra.mxu0 0.0
    %1420 = vmatprep.subr.mxu0 0.0
    %1421 = vmatpush1.msra.mxu0 0.0
    %1422 = vmatprep.subr.mxu0 0.0
    %1423 = vmatpush1.msra.mxu0 0.0
    %1424 = vmatprep.subr.mxu0 0.0
    %1425 = vmatpush1.msra.mxu0 0.0
    %1426 = vmatprep.subr.mxu0 0.0
    %1427 = vmatpush1.msra.mxu0 0.0
    %1428 = vmatprep.subr.mxu0 0.0
    %1429 = vmatpush1.msra.mxu0 0.0
    %1430 = vmatprep.subr.mxu0 0.0
    %1431 = vmatpush1.msra.mxu0 0.0
    %1432 = vmatprep.subr.mxu0 0.0
    %1433 = vmatpush1.msra.mxu0 0.0
    %1434 = vmatprep.mubr.f32.mxu0 0.0
    %1435 = vmatmul.mubr.f32.gmra.mrb[0].mxu0 %v1365
    %v1436 = vpop.f32.mrb[0].mxu0
    %v1437 = vadd.f32 0.0, %v1436
    %v1438 = vpop.f32.mrb[0].mxu0
    %v1439 = vadd.f32 0.0, %v1438
    %1440 = vmatprep.mubr.f32.mxu0 0.0
    %1441 = vmatmul.mubr.f32.gmra.mrb[0].mxu0 %v1368
    %v1442 = vpop.f32.mrb[0].mxu0
    %v1443 = vadd.f32 0.0, %v1442
    %v1444 = vpop.f32.mrb[0].mxu0
    %v1445 = vadd.f32 0.0, %v1444
    %1446 = vdwg.mxu0
    %1447 = vmatprep.subr.mxu0 %v1331
    %1448 = vmatpush1.msra.mxu0 %v1330
    %1449 = vmatprep.subr.mxu0 %v1335
    %1450 = vmatpush1.msra.mxu0 %v1334
    %1451 = vmatprep.subr.mxu0 %v1339
    %1452 = vmatpush1.msra.mxu0 %v1338
    %1453 = vmatprep.subr.mxu0 %v1343
    %1454 = vmatpush1.msra.mxu0 %v1342
    %1455 = vmatprep.subr.mxu0 %v1347
    %1456 = vmatpush1.msra.mxu0 %v1346
    %1457 = vmatprep.subr.mxu0 %v1351
    %1458 = vmatpush1.msra.mxu0 %v1350
    %1459 = vmatprep.subr.mxu0 %v1355
    %1460 = vmatpush1.msra.mxu0 %v1354
    %1461 = vmatprep.subr.mxu0 %v1359
    %1462 = vmatpush1.msra.mxu0 %v1358
    %1463 = vmatprep.subr.mxu0 %v1363
    %1464 = vmatpush1.msra.mxu0 %v1362
    %1465 = vmatprep.subr.mxu0 0.0
    %1466 = vmatpush1.msra.mxu0 0.0
    %1467 = vmatprep.subr.mxu0 0.0
    %1468 = vmatpush1.msra.mxu0 0.0
    %1469 = vmatprep.subr.mxu0 0.0
    %1470 = vmatpush1.msra.mxu0 0.0
    %1471 = vmatprep.subr.mxu0 0.0
    %1472 = vmatpush1.msra.mxu0 0.0
    %1473 = vmatprep.subr.mxu0 0.0
    %1474 = vmatpush1.msra.mxu0 0.0
    %1475 = vmatprep.subr.mxu0 0.0
    %1476 = vmatpush1.msra.mxu0 0.0
    %1477 = vmatprep.subr.mxu0 0.0
    %1478 = vmatpush1.msra.mxu0 0.0
    %1479 = vmatprep.subr.mxu0 0.0
    %1480 = vmatpush1.msra.mxu0 0.0
    %1481 = vmatprep.subr.mxu0 0.0
    %1482 = vmatpush1.msra.mxu0 0.0
    %1483 = vmatprep.subr.mxu0 0.0
    %1484 = vmatpush1.msra.mxu0 0.0
    %1485 = vmatprep.subr.mxu0 0.0
    %1486 = vmatpush1.msra.mxu0 0.0
    %1487 = vmatprep.subr.mxu0 0.0
    %1488 = vmatpush1.msra.mxu0 0.0
    %1489 = vmatprep.subr.mxu0 0.0
    %1490 = vmatpush1.msra.mxu0 0.0
    %1491 = vmatprep.subr.mxu0 0.0
    %1492 = vmatpush1.msra.mxu0 0.0
    %1493 = vmatprep.subr.mxu0 0.0
    %1494 = vmatpush1.msra.mxu0 0.0
    %1495 = vmatprep.subr.mxu0 0.0
    %1496 = vmatpush1.msra.mxu0 0.0
    %1497 = vmatprep.subr.mxu0 0.0
    %1498 = vmatpush1.msra.mxu0 0.0
    %1499 = vmatprep.subr.mxu0 0.0
    %1500 = vmatpush1.msra.mxu0 0.0
    %1501 = vmatprep.subr.mxu0 0.0
    %1502 = vmatpush1.msra.mxu0 0.0
    %1503 = vmatprep.subr.mxu0 0.0
    %1504 = vmatpush1.msra.mxu0 0.0
    %1505 = vmatprep.subr.mxu0 0.0
    %1506 = vmatpush1.msra.mxu0 0.0
    %1507 = vmatprep.subr.mxu0 0.0
    %1508 = vmatpush1.msra.mxu0 0.0
    %1509 = vmatprep.subr.mxu0 0.0
    %1510 = vmatpush1.msra.mxu0 0.0
    %1511 = vmatprep.mubr.f32.mxu0 0.0
    %1512 = vmatmul.mubr.f32.gmra.mrb[0].mxu0 %v1365
    %v1513 = vpop.f32.mrb[0].mxu0
    %v1514 = vadd.f32 0.0, %v1513
    %v1515 = vpop.f32.mrb[0].mxu0
    %v1516 = vadd.f32 0.0, %v1515
    %1517 = vmatprep.mubr.f32.mxu0 0.0
    %1518 = vmatmul.mubr.f32.gmra.mrb[0].mxu0 %v1368
    %v1519 = vpop.f32.mrb[0].mxu0
    %v1520 = vadd.f32 0.0, %v1519
    %v1521 = vpop.f32.mrb[0].mxu0
    %v1522 = vadd.f32 0.0, %v1521
    %1523 = vdwg.mxu0
    %v1524 = vadd.f32 %v1437, %v1439
    %v1525 = vadd.f32 %v1524, %v1514
    %v1526 = vadd.f32 %v1525, %v1516
    %1527 = vadd.xlane.f32.xlu0 %v1526
    %v1528 = vpop.xlane.xlu0 %1527
    %v1529 = vadd.f32 %v1443, %v1445
    %v1530 = vadd.f32 %v1529, %v1520
    %v1531 = vadd.f32 %v1530, %v1522
    %1532 = vadd.xlane.f32.xlu0 %v1531
    %v1533 = vpop.xlane.xlu0 %1532
    %v1534 = vmul.f32 %v1528, %v489
    %v1535 = vmul.f32 %v1533, %v489
    %v1536 = vmul.f32 %v1437, %v1437
    %v1537 = vmul.f32 %v1439, %v1439
    %v1538 = vmul.f32 %v1514, %v1514
    %v1539 = vmul.f32 %v1516, %v1516
    %v1540 = vmul.f32 %v1443, %v1443
    %v1541 = vmul.f32 %v1445, %v1445
    %v1542 = vmul.f32 %v1520, %v1520
    %v1543 = vmul.f32 %v1522, %v1522
    %v1544 = vadd.f32 %v1536, %v1537
    %v1545 = vadd.f32 %v1544, %v1538
    %v1546 = vadd.f32 %v1545, %v1539
    %1547 = vadd.xlane.f32.xlu0 %v1546
    %v1548 = vpop.xlane.xlu0 %1547
    %v1549 = vadd.f32 %v1540, %v1541
    %v1550 = vadd.f32 %v1549, %v1542
    %v1551 = vadd.f32 %v1550, %v1543
    %1552 = vadd.xlane.f32.xlu0 %v1551
    %v1553 = vpop.xlane.xlu0 %1552
    %v1554 = vmul.f32 %v1548, %v489
    %v1555 = vmul.f32 %v1553, %v489
    %v1556 = vmul.f32 %v1534, %v1534
    %v1557 = vmul.f32 %v1535, %v1535
    %v1558 = vsub.f32 %v1554, %v1556
    %v1559 = vsub.f32 %v1555, %v1557
    %s1560 = scalar_lea.vmem %s2, 32
    %v1561 = vld [vmem:[%s1560] sm:$0xff]
    %v1562 = vld [vmem:[%s1560 + $0x8] sm:$0xff]
    %v1563 = vadd.f32 %v1558, 1e-05
    %v1564 = vadd.f32 %v1559, 1e-05
    %v1565 = vrsqrt.pop %v1563
    %v1566 = vrsqrt.pop %v1564
    %v1567 = vmul.f32 %v1565, %v1561
    %v1568 = vmul.f32 %v1566, %v1562
    %v1569 = vmul.f32 %v1534, %v1567
    %v1570 = vmul.f32 %v1535, %v1568
    %1573 = vrot.lane.b32.xlu0 %v1569, 1
    %v1574 = vpop.permute.xlu0 %1573
    %1575 = vrot.lane.b32.xlu0 %v1570, 1
    %v1576 = vpop.permute.xlu0 %1575
    %v1579 = vsub.f32 %v1561, %v1574
    %v1580 = vsub.f32 %v1562, %v1576
    %1582 = vset.pattern.permute.xlu0 0
    %1583 = vperm.xlu0 %1582, %v1567
    %v1584 = vpop.permute.xlu0 %1583
    %1587 = vset.pattern.permute.xlu0 0
    %1588 = vperm.xlu0 %1587, %v1568
    %v1589 = vpop.permute.xlu0 %1588
    %v1591 = vmul.f32 %v1437, %v1584
    %v1592 = vmul.f32 %v1439, %v1584
    %v1593 = vmul.f32 %v1514, %v1584
    %v1594 = vmul.f32 %v1516, %v1584
    %v1595 = vmul.f32 %v1443, %v1589
    %v1596 = vmul.f32 %v1445, %v1589
    %v1597 = vmul.f32 %v1520, %v1589
    %v1598 = vmul.f32 %v1522, %v1589
    %1600 = vset.pattern.permute.xlu0 1
    %1601 = vperm.xlu0 %1600, %v1579
    %v1602 = vpop.permute.xlu0 %1601
    %1605 = vset.pattern.permute.xlu0 1
    %1606 = vperm.xlu0 %1605, %v1580
    %v1607 = vpop.permute.xlu0 %1606
    %v1609 = vadd.f32 %v1591, %v1602
    %v1610 = vadd.f32 %v1592, %v1602
    %v1611 = vadd.f32 %v1593, %v1602
    %v1612 = vadd.f32 %v1594, %v1602
    %v1613 = vadd.f32 %v1595, %v1607
    %v1614 = vadd.f32 %v1596, %v1607
    %v1615 = vadd.f32 %v1597, %v1607
    %v1616 = vadd.f32 %v1598, %v1607
    %v1617 = vmax.f32 %v1609, 0.0
    %v1618 = vmax.f32 %v1610, 0.0
    %v1619 = vmax.f32 %v1611, 0.0
    %v1620 = vmax.f32 %v1612, 0.0
    %v1621 = vadd.f32 %v1617, %v1613
    %v1622 = vadd.f32 %v1618, %v1614
    %v1623 = vadd.f32 %v1619, %v1615
    %v1624 = vadd.f32 %v1620, %v1616
    %v1625 = vmax.f32 %v1621, 0.0
    %v1626 = vmax.f32 %v1622, 0.0
    %v1627 = vmax.f32 %v1623, 0.0
    %v1628 = vmax.f32 %v1624, 0.0
    %v1629 = vadd.f32 %v1625, %v1626
    %v1630 = vadd.f32 %v1629, %v1627
    %v1631 = vadd.f32 %v1630, %v1628
    %1632 = vadd.xlane.f32.xlu0 %v1631
    %v1633 = vpop.xlane.xlu0 %1632
    %v1634 = vmul.f32 %v1633, %v489
    %v1635 = vmul.f32 %v1625, %v1625
    %v1636 = vmul.f32 %v1626, %v1626
    %v1637 = vmul.f32 %v1627, %v1627
    %v1638 = vmul.f32 %v1628, %v1628
    %v1639 = vadd.f32 %v1635, %v1636
    %v1640 = vadd.f32 %v1639, %v1637
    %v1641 = vadd.f32 %v1640, %v1638
    %1642 = vadd.xlane.f32.xlu0 %v1641
    %v1643 = vpop.xlane.xlu0 %1642
    %v1644 = vmul.f32 %v1643, %v489
    %v1645 = vmul.f32 %v1634, %v1634
    %v1646 = vsub.f32 %v1644, %v1645
    %s1647 = scalar_lea.vmem %s3, 16
    %v1648 = vld [vmem:[%s1647] sm:$0xff]
    %v1649 = vadd.f32 %v1646, 1e-05
    %v1650 = vrsqrt.pop %v1649
    %v1651 = vmul.f32 %v1650, %v1648
    %v1652 = vmul.f32 %v1634, %v1651
    %1654 = vrot.lane.b32.xlu0 %v1652, 1
    %v1655 = vpop.permute.xlu0 %1654
    %v1657 = vsub.f32 %v1648, %v1655
    %1659 = vset.pattern.permute.xlu0 0
    %1660 = vperm.xlu0 %1659, %v1651
    %v1661 = vpop.permute.xlu0 %1660
    %v1663 = vmul.f32 %v1625, %v1661
    %v1664 = vmul.f32 %v1626, %v1661
    %v1665 = vmul.f32 %v1627, %v1661
    %v1666 = vmul.f32 %v1628, %v1661
    %1668 = vset.pattern.permute.xlu0 1
    %1669 = vperm.xlu0 %1668, %v1657
    %v1670 = vpop.permute.xlu0 %1669
    %v1672 = vadd.f32 %v1663, %v1670
    %v1673 = vadd.f32 %v1664, %v1670
    %v1674 = vadd.f32 %v1665, %v1670
    %v1675 = vadd.f32 %v1666, %v1670
    %1676 = vst [vmem:[#allocation2] sm:$0xff] %v1672
    %1677 = vst [vmem:[#allocation2 + $0x8] sm:$0xff] %v1673
    %1678 = vst [vmem:[#allocation2 + $0x10] sm:$0xff] %v1674
    %1679 = vst [vmem:[#allocation2 + $0x18] sm:$0xff] %v1675
    %v1680 = vld [vmem:[#allocation2] sm:$0xff]
    %v1681 = vld [vmem:[#allocation2 + $0x8] sm:$0xff]
    %1682 = vst [vmem:[#allocation4] sm:$0xff] %v1680
    %1683 = vst [vmem:[#allocation4 + $0x8] sm:$0xff] %v1681
    %v1684 = vld [vmem:[#allocation2 + $0x10] sm:$0xff]
    %v1685 = vld [vmem:[#allocation2 + $0x18] sm:$0xff]
    %s1686 = scalar_lea.vmem [#allocation4], 16
    %1687 = vst [vmem:[%s1686] sm:$0xff] %v1684
    %1688 = vst [vmem:[%s1686 + $0x8] sm:$0xff] %v1685
    // Predicated region
    $region18: #{tpu_custom_call.1} parent=1 // pred_check
      _
    $region19: #{tpu_custom_call.1} parent=1 // pred_check_branch
      %1690 = sbr.rel (0) target = $region21
    $region20: #{tpu_custom_call.1} parent=1 // pred_region
      %s1692 = ssub.s32 512, 512
      %1693 = vsyncadd [#allocation5], %s1692
      %s1694 = sshll.u32 [#allocation4], 4
      %s1695 = int_to_ptr.vmem [resolvable:$true] %s1694
      %1700 = dma.vmem_to_hbm [thread:$0]  %s1695, 512, %s4, [#allocation5], 256, 256, 16
    $region21: #{tpu_custom_call.1} parent=1 // pred_fallthru
      _
    // Predicated region
    $region22: #{tpu_custom_call.1} parent=1 // pred_check
      _
    $region23: #{tpu_custom_call.1} parent=1 // pred_check_branch
      %1702 = sbr.rel (0) target = $region25
    $region24: #{tpu_custom_call.1} parent=1 // pred_region
      %1703 = dma.done [#allocation5], 512
    $region25: #{tpu_custom_call.1} parent=1 // pred_fallthru
      _
    %1704 = vsyncpa [#allocation5], 1

</llo_original>
